<compile_context>
chip_gen: v7x
topology: tpu7x:2x2x1
jax: 0.10.0
libtpu: 0.0.40
codegen_flags: <defaults>
</compile_context>

<pallas_src>
import functools
import math

import jax
import jax.numpy as jnp
from jax.experimental import pallas as pl
from jax.experimental.pallas import tpu as pltpu


def _round_up(x, m):
    return (x + m - 1) // m * m


def _sine_layer_kernel(x_ref, w_ref, b_ref, o_ref, *, omega_0):
    # MXU matmul with f32 accumulation; bias add + scaled sin on VPU/EUP.
    z = jnp.dot(x_ref[...], w_ref[...], preferred_element_type=jnp.float32)
    z = z + b_ref[...]  # b_ref is (1, Np), broadcasts over rows
    o_ref[...] = jnp.sin(omega_0 * z).astype(o_ref.dtype)


def _choose_block_m(M, Kp, Np, in_bytes, out_bytes, vmem_budget_bytes):
    """Largest row tile fitting the VMEM budget (double-buffered in/out +
    resident weight), clamped to [128, 1024] and to the padded batch."""
    fixed = Kp * Np * in_bytes + 128 * Np * 4          # resident weight (+ bias slack)
    per_row = 2 * (Kp * in_bytes + Np * out_bytes)     # 2x-buffered x tile + out tile
    avail = vmem_budget_bytes - fixed
    bm = avail // per_row if avail > 0 else 128
    bm = max(128, min(1024, (bm // 128) * 128))
    # Megacore: keep at least 2 grid steps when the batch allows it.
    if M > 128:
        half_m = _round_up(-(-M // 2), 128)
        bm = min(bm, half_m)
    bm = min(bm, _round_up(M, 128))
    return int(bm)


def sine_layer(x, weight_t, bias, *, omega_0=30.0, block_m=None,
               compute_dtype=None, vmem_budget_bytes=20 * 1024 * 1024):
    """x: [M, in_features], weight_t: [in_features, out_features], bias: [out_features].

    compute_dtype=jnp.bfloat16 casts x / weight_t for the MXU (f32 accumulation
    is kept); output dtype matches x.dtype.
    """
    M, K = x.shape
    K2, N = weight_t.shape
    assert K == K2
    out_dtype = x.dtype

    in_dtype = compute_dtype if compute_dtype is not None else x.dtype
    in_bytes = jnp.dtype(in_dtype).itemsize
    out_bytes = jnp.dtype(out_dtype).itemsize

    # Lane-dense padding: K and N up to multiples of 128 (zero padding is exact
    # for the matmul; padded output columns are sliced away below).
    Kp = _round_up(K, 128)
    Np = _round_up(N, 128)

    if block_m is None:
        block_m = _choose_block_m(M, Kp, Np, in_bytes, out_bytes, vmem_budget_bytes)
    Mp = _round_up(M, block_m)

    # Host-side padding / casts (cheap layout plumbing, done once per call).
    xp = jnp.zeros((Mp, Kp), in_dtype).at[:M, :K].set(x.astype(in_dtype))
    wp = jnp.zeros((Kp, Np), in_dtype).at[:K, :N].set(weight_t.astype(in_dtype))
    bp = jnp.zeros((1, Np), jnp.float32).at[0, :N].set(bias.astype(jnp.float32))

    kernel = functools.partial(_sine_layer_kernel, omega_0=float(omega_0))

    out = pl.pallas_call(
        kernel,
        out_shape=jax.ShapeDtypeStruct((Mp, Np), out_dtype),
        grid_spec=pltpu.PrefetchScalarGridSpec(
            num_scalar_prefetch=0,
            grid=(Mp // block_m,),
            in_specs=[
                pl.BlockSpec((block_m, Kp), lambda i: (i, 0)),   # x tile (pipelined)
                pl.BlockSpec((Kp, Np), lambda i: (0, 0)),        # weight, VMEM-resident
                pl.BlockSpec((1, Np), lambda i: (0, 0)),         # bias, VMEM-resident
            ],
            out_specs=pl.BlockSpec((block_m, Np), lambda i: (i, 0)),
        ),
        compiler_params=pltpu.CompilerParams(
            dimension_semantics=("parallel",),
            vmem_limit_bytes=40 * 1024 * 1024,
        ),
    )(xp, wp, bp)

    return out[:M, :N]


def init_sine_layer_params(key, in_features, out_features, *, is_first=False,
                           omega_0=30.0, bias=True):
    """Deterministic SIREN init mirroring SineLayer.init_weights (PyTorch Linear
    weight is [out, in]; we store it transposed as [in, out])."""
    kw, kb = jax.random.split(key)
    if is_first:
        bound_w = 1.0 / in_features
    else:
        bound_w = math.sqrt(6.0 / in_features) / omega_0
    weight = jax.random.uniform(
        kw, (out_features, in_features), jnp.float32, -bound_w, bound_w)
    bound_b = 1.0 / math.sqrt(in_features)  # nn.Linear default bias init
    if bias:
        b = jax.random.uniform(kb, (out_features,), jnp.float32, -bound_b, bound_b)
    else:
        b = jnp.zeros((out_features,), jnp.float32)
    return weight.T, b  # [in, out], [out]


def sine_layer_ref(x, weight_t, bias, omega_0=30.0):
    return jnp.sin(omega_0 * (x @ weight_t + bias))


if __name__ == "__main__":
    key = jax.random.PRNGKey(0)
    k_x, k_p = jax.random.split(key)

    # Small demo shapes: SIREN first layer, ragged batch (exercises M padding),
    # K=3 and N=64 (exercise K/N padding to lane-dense 128 multiples).
    batch = 200
    in_features = 3
    out_features = 64
    omega_0 = 30.0

    x = jax.random.normal(k_x, (batch, in_features), jnp.float32)
    weight_t, bias = init_sine_layer_params(
        k_p, in_features, out_features, is_first=True, omega_0=omega_0)

    # f32 path (exact nn.Linear + sin semantics).
    y_ref = sine_layer_ref(x, weight_t, bias, omega_0)
    y = sine_layer(x, weight_t, bias, omega_0=omega_0)
    y = jax.block_until_ready(y)
    assert y.shape == (batch, out_features)
    assert jnp.allclose(y, y_ref, atol=1e-5, rtol=1e-5), "f32 mismatch vs reference"

    # bf16-input fast path (halves input HBM traffic; f32 MXU accumulation).
    # Validate against a reference computed on the SAME bf16-quantized inputs:
    # omega_0=30 amplifies input-quantization error in sin(), so comparing
    # against the full-f32 reference is not a kernel-correctness test.
    y_bf16 = sine_layer(x, weight_t, bias, omega_0=omega_0,
                        compute_dtype=jnp.bfloat16)
    y_bf16 = jax.block_until_ready(y_bf16)
    x_q = x.astype(jnp.bfloat16).astype(jnp.float32)
    w_q = weight_t.astype(jnp.bfloat16).astype(jnp.float32)
    y_bf16_ref = sine_layer_ref(x_q, w_q, bias, omega_0)
    assert y_bf16.shape == (batch, out_features)
    assert jnp.allclose(y_bf16, y_bf16_ref, atol=1e-4, rtol=1e-4), \
        "bf16 path mismatch vs quantized-input reference"

    print("KERNEL_OK")
</pallas_src>

<mosaic_0001>
module attributes {stable_mosaic.version = 11 : i64} {
  func.func @_sine_layer_kernel(%arg0: i32, %arg1: memref<128x128xf32, #tpu.memory_space<vmem>>, %arg2: memref<128x128xf32, #tpu.memory_space<vmem>>, %arg3: memref<1x128xf32, #tpu.memory_space<vmem>>, %arg4: memref<128x128xf32, #tpu.memory_space<vmem>>) attributes {dimension_semantics = [#tpu.dimension_semantics<parallel>], iteration_bounds = array<i64: 2>, scalar_prefetch = 0 : i64, scratch_operands = 0 : i64, tpu.core_type = #tpu.core_type<tc>, window_params = [{transform_indices = @transform_0, window_bounds = array<i64: 128, 128>}, {pipeline_mode = #tpu.pipeline_mode<synchronous>, transform_indices = @transform_1, window_bounds = array<i64: 128, 128>}, {pipeline_mode = #tpu.pipeline_mode<synchronous>, transform_indices = @transform_2, window_bounds = array<i64: 1, 128>}, {transform_indices = @transform_3, window_bounds = array<i64: 128, 128>}]} {
    %c0 = arith.constant 0 : index
    %c0_0 = arith.constant 0 : index
    %0 = vector.load %arg1[%c0, %c0_0] : memref<128x128xf32, #tpu.memory_space<vmem>>, vector<128x128xf32>
    %c0_1 = arith.constant 0 : index
    %c0_2 = arith.constant 0 : index
    %1 = vector.load %arg2[%c0_1, %c0_2] : memref<128x128xf32, #tpu.memory_space<vmem>>, vector<128x128xf32>
    %cst = arith.constant dense<0.000000e+00> : vector<128x128xf32>
    %2 = tpu.matmul %0, %1, %cst {dimension_numbers = #tpu.dot_dimension_numbers<[1], [0], [0], [1], [0, 0, 1, 1], [], []>} : vector<128x128xf32>, vector<128x128xf32>, vector<128x128xf32> -> vector<128x128xf32>
    %c0_3 = arith.constant 0 : index
    %c0_4 = arith.constant 0 : index
    %3 = vector.load %arg3[%c0_3, %c0_4] : memref<1x128xf32, #tpu.memory_space<vmem>>, vector<1x128xf32>
    %4 = vector.broadcast %3 : vector<1x128xf32> to vector<128x128xf32>
    %5 = arith.addf %2, %4 : vector<128x128xf32>
    %cst_5 = arith.constant 3.000000e+01 : f32
    %6 = vector.broadcast %cst_5 : f32 to vector<128x128xf32>
    %7 = arith.mulf %6, %5 : vector<128x128xf32>
    %8 = math.sin %7 : vector<128x128xf32>
    %c0_6 = arith.constant 0 : index
    %c0_7 = arith.constant 0 : index
    %9 = vector.load %arg4[%c0_6, %c0_7] : memref<128x128xf32, #tpu.memory_space<vmem>>, vector<128x128xf32>
    tpu.vector_store %arg4[%c0_6, %c0_7], %8 {strides = array<i32>} : memref<128x128xf32, #tpu.memory_space<vmem>>, vector<128x128xf32>,
    return
  }
  func.func @transform_0(%arg0: i32) -> (i32, i32) {
    %c0_i32 = arith.constant 0 : i32
    %c0_i32_0 = arith.constant 0 : i32
    return %arg0, %c0_i32 : i32, i32
  }
  func.func @transform_1(%arg0: i32) -> (i32, i32) {
    %c0_i32 = arith.constant 0 : i32
    %c0_i32_0 = arith.constant 0 : i32
    %c0_i32_1 = arith.constant 0 : i32
    return %c0_i32, %c0_i32_0 : i32, i32
  }
  func.func @transform_2(%arg0: i32) -> (i32, i32) {
    %c0_i32 = arith.constant 0 : i32
    %c0_i32_0 = arith.constant 0 : i32
    %c0_i32_1 = arith.constant 0 : i32
    return %c0_i32, %c0_i32_0 : i32, i32
  }
  func.func @transform_3(%arg0: i32) -> (i32, i32) {
    %c0_i32 = arith.constant 0 : i32
    %c0_i32_0 = arith.constant 0 : i32
    return %arg0, %c0_i32 : i32, i32
  }
}

</mosaic_0001>

<llo_original>
// kernel: tpu_custom_call.1
$region0: #{tpu_custom_call.1}
  #allocation0 [shape = 'u32[]', space=smem, size = 0x4, offset = 0x4, fixed_abs, tag = 'smem constant byte address 0x4 - core index']
  #allocation1 [shape = 'u32[144,128]{1,0:T(1,128)}', space=vmem, size = 0x12000, scoped, tag = 'internal scratch']
  %s0 = inlined_call_operand.hbm [shape: f32[256,128], index: 0, kind: input, shape index: {}]
  %s1 = inlined_call_operand.hbm [shape: f32[128,128], index: 1, kind: input, shape index: {}]
  %s2 = inlined_call_operand.vmem [shape: f32[1,128], index: 2, kind: input, shape index: {}]
  %s3 = inlined_call_operand.hbm [shape: f32[256,128], index: 3, kind: output, shape index: {}]
  %s4 = sld [smem:[#allocation0]]
  $region53: #{tpu_custom_call.1} parent=0
    _
  %s6 = ssub.s32 1, %s4
  %s7 = scalar_select 0, %s6, %s4
  $region1: #{tpu_custom_call.1} parent=0
    #allocation2 [shape = 'u8[131072]{0}', space=vmem, size = 0x20000, scoped, tag = 'input window, operand 0']
    #allocation3 [shape = 's32[2]{0}', space=sflag, size = 0x8, scoped, tag = 'scoped memory for tpu_custom_call.1']
    #allocation4 [shape = 's32[2]{0}', space=sflag, size = 0x8, scoped, tag = 'scoped memory for tpu_custom_call.1']
    #allocation5 [shape = 'u8[65536]{0}', space=vmem, size = 0x10000, scoped, tag = 'input window, operand 1, single buffered']
    #allocation6 [shape = 's32[1]{0}', space=sflag, size = 0x4, scoped, tag = 'scoped memory for tpu_custom_call.1']
    #allocation7 [shape = 'u8[131072]{0}', space=vmem, size = 0x20000, scoped, tag = 'output window, operand 0']
    %8 = vsyncpa [#allocation3], 0
    %s9 = scalar_lea.sflag [#allocation3], 1
    %10 = vsyncpa %s9, 0
    %11 = vsyncpa [#allocation6], 0
    %12 = vsyncpa [#allocation4], 0
    %s13 = scalar_lea.sflag [#allocation4], 1
    %14 = vsyncpa %s13, 0
    loop: start=0, step=1, limit=4
    $region2: #{tpu_custom_call.1} parent=1 // loop_pre_header
      _
    $region3: #{tpu_custom_call.1} parent=1 // loop_header
      %s16 = sphi 0, %s20
      %p17 = scmp.ge.s32.totalorder %s16, 4
      %s26 = sphi 0, %s28
      %s29 = sphi 0, %s26
      %s30 = sphi 0, %s29
      %s46 = sphi 0, %s30
      %s50 = sphi 0, %s50
      %s52 = sphi 0, %s50
      %s53 = sphi 0, %s52
      %s67 = sphi 0, %s53
      %s71 = sphi 0, %s71
      %s73 = sphi 0, %s71
      %s74 = sphi 0, %s73
      %s88 = sphi 0, %s74
      %s94 = sphi 0, %s96
      %s97 = sphi 0, %s94
      %s98 = sphi 0, %s97
      %s114 = sphi 0, %s98
    $region4: #{tpu_custom_call.1} parent=1 // loop_header_branch
      %19 = sbr.rel (%p17) target = $region8
    $region5: #{tpu_custom_call.1} parent=1 // loop_body
      %s21 = ssub.s32 %s16, 1
      %s22 = ssub.s32 %s16, 2
      %s23 = sadd.s32 %s16, 1
      %s24 = ssub.s32 %s16, %s23
      %p25 = scmp.eq.s32.totalorder %s24, 0
      %s27 = sadd.s32 %s26, 1
      %s28 = scalar_select %p25, %s26, %s27
      %p31 = pneg %p25
      %p32 = scmp.eq.s32.totalorder %s16, 1
      %p33 = por %p31, %p32
      %p34 = scmp.ne.s32.totalorder %s26, %s29
      %p35 = scmp.eq.s32.totalorder %s16, 0
      %p36 = por %p34, %p35
      %p37 = scmp.ne.s32.totalorder %s26, %s29
      %p38 = scmp.eq.s32.totalorder %s21, 1
      %p39 = por %p37, %p38
      %p40 = scmp.ne.s32.totalorder %s29, %s30
      %p41 = scmp.eq.s32.totalorder %s21, 0
      %p42 = por %p40, %p41
      %p43 = scmp.ne.s32.totalorder %s29, %s30
      %p44 = scmp.eq.s32.totalorder %s22, 1
      %p45 = por %p43, %p44
      %p47 = scmp.ne.s32.totalorder %s30, %s46
      %p48 = scmp.eq.s32.totalorder %s22, 0
      %p49 = por %p47, %p48
      %s51 = sadd.s32 %s50, 1
      %p54 = scmp.eq.s32.totalorder %s16, 1
      %p55 = scmp.ne.s32.totalorder %s50, %s52
      %p56 = scmp.eq.s32.totalorder %s16, 0
      %p57 = por %p55, %p56
      %p58 = scmp.ne.s32.totalorder %s50, %s52
      %p59 = scmp.eq.s32.totalorder %s21, 1
      %p60 = por %p58, %p59
      %p61 = scmp.ne.s32.totalorder %s52, %s53
      %p62 = scmp.eq.s32.totalorder %s21, 0
      %p63 = por %p61, %p62
      %p64 = scmp.ne.s32.totalorder %s52, %s53
      %p65 = scmp.eq.s32.totalorder %s22, 1
      %p66 = por %p64, %p65
      %p68 = scmp.ne.s32.totalorder %s53, %s67
      %p69 = scmp.eq.s32.totalorder %s22, 0
      %p70 = por %p68, %p69
      %s72 = sadd.s32 %s71, 1
      %p75 = scmp.eq.s32.totalorder %s16, 1
      %p76 = scmp.ne.s32.totalorder %s71, %s73
      %p77 = scmp.eq.s32.totalorder %s16, 0
      %p78 = por %p76, %p77
      %p79 = scmp.ne.s32.totalorder %s71, %s73
      %p80 = scmp.eq.s32.totalorder %s21, 1
      %p81 = por %p79, %p80
      %p82 = scmp.ne.s32.totalorder %s73, %s74
      %p83 = scmp.eq.s32.totalorder %s21, 0
      %p84 = por %p82, %p83
      %p85 = scmp.ne.s32.totalorder %s73, %s74
      %p86 = scmp.eq.s32.totalorder %s22, 1
      %p87 = por %p85, %p86
      %p89 = scmp.ne.s32.totalorder %s74, %s88
      %p90 = scmp.eq.s32.totalorder %s22, 0
      %p91 = por %p89, %p90
      %s92 = ssub.s32 %s16, %s23
      %p93 = scmp.eq.s32.totalorder %s92, 0
      %s95 = sadd.s32 %s94, 1
      %s96 = scalar_select %p93, %s94, %s95
      %p99 = pneg %p93
      %p100 = scmp.eq.s32.totalorder %s16, 1
      %p101 = por %p99, %p100
      %p102 = scmp.ne.s32.totalorder %s94, %s97
      %p103 = scmp.eq.s32.totalorder %s16, 0
      %p104 = por %p102, %p103
      %p105 = scmp.ne.s32.totalorder %s94, %s97
      %p106 = scmp.eq.s32.totalorder %s21, 1
      %p107 = por %p105, %p106
      %p108 = scmp.ne.s32.totalorder %s97, %s98
      %p109 = scmp.eq.s32.totalorder %s21, 0
      %p110 = por %p108, %p109
      %p111 = scmp.ne.s32.totalorder %s97, %s98
      %p112 = scmp.eq.s32.totalorder %s22, 1
      %p113 = por %p111, %p112
      %p115 = scmp.ne.s32.totalorder %s98, %s114
      %p116 = scmp.eq.s32.totalorder %s22, 0
      %p117 = por %p115, %p116
      %p118 = scmp.le.s32.totalorder 1, %s16
      %p119 = scmp.lt.s32.totalorder %s16, 3
      %p120 = pnand %p118, %p119
      %p121 = pneg %p120
      // Predicated region
      $region9: #{tpu_custom_call.1} parent=5 // pred_check
        _
      $region10: #{tpu_custom_call.1} parent=5 // pred_check_branch
        %123 = sbr.rel (%p120) target = $region12
      $region11: #{tpu_custom_call.1} parent=5 // pred_region
        %s124 = ssub.s32 %s16, 1
        // Predicated region
        $region13: #{tpu_custom_call.1} parent=11 // pred_check
          %p125 = pneg %p63
        $region14: #{tpu_custom_call.1} parent=11 // pred_check_branch
          %127 = sbr.rel (%p125) target = $region16
        $region15: #{tpu_custom_call.1} parent=11 // pred_region
          %s129 = ssub.s32 2048, 2048
          %130 = vsyncadd [#allocation6], %s129
          %s131 = sshll.u32 [#allocation5], 4
          %s132 = int_to_ptr.vmem [resolvable:$true] %s131
          %137 = dma.hbm_to_vmem [thread:$0]  %s1, 2048, %s132, [#allocation6], 128, 128, 8
        $region16: #{tpu_custom_call.1} parent=11 // pred_fallthru
          _
        // Predicated region
        $region17: #{tpu_custom_call.1} parent=11 // pred_check
          %p138 = pneg %p84
        $region18: #{tpu_custom_call.1} parent=11 // pred_check_branch
          %140 = sbr.rel (%p138) target = $region20
        $region19: #{tpu_custom_call.1} parent=11 // pred_region
          _
        $region20: #{tpu_custom_call.1} parent=11 // pred_fallthru
          _
      $region12: #{tpu_custom_call.1} parent=5 // pred_fallthru
        _
      %p141 = scmp.lt.s32.totalorder %s16, 2
      // Predicated region
      $region21: #{tpu_custom_call.1} parent=5 // pred_check
        %p142 = pneg %p141
      $region22: #{tpu_custom_call.1} parent=5 // pred_check_branch
        %144 = sbr.rel (%p142) target = $region24
      $region23: #{tpu_custom_call.1} parent=5 // pred_region
        // Predicated region
        $region25: #{tpu_custom_call.1} parent=23 // pred_check
          %p145 = pneg %p36
        $region26: #{tpu_custom_call.1} parent=23 // pred_check_branch
          %147 = sbr.rel (%p145) target = $region28
        $region27: #{tpu_custom_call.1} parent=23 // pred_region
          %s148 = sand.u32 %s26, 1
          %s149 = scalar_lea.sflag [#allocation3], %s148
          %s150 = sand.u32 %s26, 1
          %s151 = smul.addr %s150, 128
          %s152 = scalar_lea.vmem [#allocation2], %s151
          %s153 = smul.u32 16, %s16
          %s155 = ssub.s32 2048, 2048
          %156 = vsyncadd %s149, %s155
          %s157 = smul.addr %s153, 128
          %s158 = scalar_lea.hbm %s0, %s157
          %s159 = sshll.u32 %s152, 4
          %s160 = int_to_ptr.vmem [resolvable:$true] %s159
          %165 = dma.hbm_to_vmem [thread:$0]  %s158, 2048, %s160, %s149, 128, 128, 8
        $region28: #{tpu_custom_call.1} parent=23 // pred_fallthru
          _
      $region24: #{tpu_custom_call.1} parent=5 // pred_fallthru
        _
      %p166 = scmp.le.s32.totalorder 1, %s16
      %p167 = scmp.lt.s32.totalorder %s16, 3
      %p168 = pnand %p166, %p167
      %p169 = pneg %p168
      // Predicated region
      $region29: #{tpu_custom_call.1} parent=5 // pred_check
        _
      $region30: #{tpu_custom_call.1} parent=5 // pred_check_branch
        %171 = sbr.rel (%p168) target = $region32
      $region31: #{tpu_custom_call.1} parent=5 // pred_region
        %s172 = ssub.s32 %s16, 1
        %s173 = sand.u32 %s29, 1
        %s174 = scalar_lea.sflag [#allocation3], %s173
        %s175 = sand.u32 %s29, 1
        %s176 = smul.addr %s175, 128
        %s177 = scalar_lea.vmem [#allocation2], %s176
        // Predicated region
        $region33: #{tpu_custom_call.1} parent=31 // pred_check
          %p178 = pneg %p42
        $region34: #{tpu_custom_call.1} parent=31 // pred_check_branch
          %180 = sbr.rel (%p178) target = $region36
        $region35: #{tpu_custom_call.1} parent=31 // pred_region
          %181 = dma.done %s174, 2048
        $region36: #{tpu_custom_call.1} parent=31 // pred_fallthru
          _
        // Predicated region
        $region37: #{tpu_custom_call.1} parent=31 // pred_check
          %p182 = pneg %p63
        $region38: #{tpu_custom_call.1} parent=31 // pred_check_branch
          %184 = sbr.rel (%p182) target = $region40
        $region39: #{tpu_custom_call.1} parent=31 // pred_region
          %185 = dma.done [#allocation6], 2048
        $region40: #{tpu_custom_call.1} parent=31 // pred_fallthru
          _
        %s186 = sand.u32 %s29, 1
        %s187 = scalar_lea.sflag [#allocation3], %s186
        %s188 = sand.u32 %s29, 1
        %s189 = smul.addr %s188, 128
        %s190 = scalar_lea.vmem [#allocation2], %s189
        %p191 = pneg %p42
        %p192 = pneg %p39
        %p193 = pneg %p63
        %p194 = pneg %p60
        %p195 = pneg %p84
        %p196 = pneg %p81
        %p197 = pneg %p110
        %p198 = pneg %p107
        %s199 = sand.u32 %s97, 1
        %s200 = scalar_lea.sflag [#allocation4], %s199
        %s201 = sand.u32 %s97, 1
        %s202 = smul.addr %s201, 128
        %s203 = scalar_lea.vmem [#allocation7], %s202
        %s204 = smul.u32 16, %s21
        %s205 = smul.u32 16, %s21
        %v206 = vld [vmem:[%s177] sm:$0xff]
        %v207 = vld [vmem:[%s177 + $0x8] sm:$0xff]
        %v208 = vld [vmem:[%s177 + $0x10] sm:$0xff]
        %v209 = vld [vmem:[%s177 + $0x18] sm:$0xff]
        %v210 = vld [vmem:[%s177 + $0x20] sm:$0xff]
        %v211 = vld [vmem:[%s177 + $0x28] sm:$0xff]
        %v212 = vld [vmem:[%s177 + $0x30] sm:$0xff]
        %v213 = vld [vmem:[%s177 + $0x38] sm:$0xff]
        %v214 = vld [vmem:[%s177 + $0x40] sm:$0xff]
        %v215 = vld [vmem:[%s177 + $0x48] sm:$0xff]
        %v216 = vld [vmem:[%s177 + $0x50] sm:$0xff]
        %v217 = vld [vmem:[%s177 + $0x58] sm:$0xff]
        %v218 = vld [vmem:[%s177 + $0x60] sm:$0xff]
        %v219 = vld [vmem:[%s177 + $0x68] sm:$0xff]
        %v220 = vld [vmem:[%s177 + $0x70] sm:$0xff]
        %v221 = vld [vmem:[%s177 + $0x78] sm:$0xff]
        %v222 = vld [vmem:[#allocation5] sm:$0xff]
        %v223 = vld [vmem:[#allocation5 + $0x8] sm:$0xff]
        %v224 = vld [vmem:[#allocation5 + $0x10] sm:$0xff]
        %v225 = vld [vmem:[#allocation5 + $0x18] sm:$0xff]
        %v226 = vld [vmem:[#allocation5 + $0x20] sm:$0xff]
        %v227 = vld [vmem:[#allocation5 + $0x28] sm:$0xff]
        %v228 = vld [vmem:[#allocation5 + $0x30] sm:$0xff]
        %v229 = vld [vmem:[#allocation5 + $0x38] sm:$0xff]
        %v230 = vld [vmem:[#allocation5 + $0x40] sm:$0xff]
        %v231 = vld [vmem:[#allocation5 + $0x48] sm:$0xff]
        %v232 = vld [vmem:[#allocation5 + $0x50] sm:$0xff]
        %v233 = vld [vmem:[#allocation5 + $0x58] sm:$0xff]
        %v234 = vld [vmem:[#allocation5 + $0x60] sm:$0xff]
        %v235 = vld [vmem:[#allocation5 + $0x68] sm:$0xff]
        %v236 = vld [vmem:[#allocation5 + $0x70] sm:$0xff]
        %v237 = vld [vmem:[#allocation5 + $0x78] sm:$0xff]
        %v238 = vld [vmem:[%s2] sm:$0x1]
        %v240 = vlaneseq
        %v241 = vshrl.u32 %v240, 7
        %v242 = vsub.s32 0, %v241
        %v243 = vrot.slane %v238, %v242
        %245 = vmatprep.subr.mxu0 0.0
        %246 = vmatpush1.msra.mxu0 %v222
        %247 = vmatprep.subr.mxu0 0.0
        %248 = vmatpush1.msra.mxu0 %v223
        %249 = vmatprep.subr.mxu0 0.0
        %250 = vmatpush1.msra.mxu0 %v224
        %251 = vmatprep.subr.mxu0 0.0
        %252 = vmatpush1.msra.mxu0 %v225
        %253 = vmatprep.subr.mxu0 0.0
        %254 = vmatpush1.msra.mxu0 %v226
        %255 = vmatprep.subr.mxu0 0.0
        %256 = vmatpush1.msra.mxu0 %v227
        %257 = vmatprep.subr.mxu0 0.0
        %258 = vmatpush1.msra.mxu0 %v228
        %259 = vmatprep.subr.mxu0 0.0
        %260 = vmatpush1.msra.mxu0 %v229
        %261 = vmatprep.subr.mxu0 0.0
        %262 = vmatpush1.msra.mxu0 %v230
        %263 = vmatprep.subr.mxu0 0.0
        %264 = vmatpush1.msra.mxu0 %v231
        %265 = vmatprep.subr.mxu0 0.0
        %266 = vmatpush1.msra.mxu0 %v232
        %267 = vmatprep.subr.mxu0 0.0
        %268 = vmatpush1.msra.mxu0 %v233
        %269 = vmatprep.subr.mxu0 0.0
        %270 = vmatpush1.msra.mxu0 %v234
        %271 = vmatprep.subr.mxu0 0.0
        %272 = vmatpush1.msra.mxu0 %v235
        %273 = vmatprep.subr.mxu0 0.0
        %274 = vmatpush1.msra.mxu0 %v236
        %275 = vmatprep.subr.mxu0 0.0
        %276 = vmatpush1.msra.mxu0 %v237
        %277 = vmatprep.subr.mxu0 0.0
        %278 = vmatpush1.msra.mxu0 0.0
        %279 = vmatprep.subr.mxu0 0.0
        %280 = vmatpush1.msra.mxu0 0.0
        %281 = vmatprep.subr.mxu0 0.0
        %282 = vmatpush1.msra.mxu0 0.0
        %283 = vmatprep.subr.mxu0 0.0
        %284 = vmatpush1.msra.mxu0 0.0
        %285 = vmatprep.subr.mxu0 0.0
        %286 = vmatpush1.msra.mxu0 0.0
        %287 = vmatprep.subr.mxu0 0.0
        %288 = vmatpush1.msra.mxu0 0.0
        %289 = vmatprep.subr.mxu0 0.0
        %290 = vmatpush1.msra.mxu0 0.0
        %291 = vmatprep.subr.mxu0 0.0
        %292 = vmatpush1.msra.mxu0 0.0
        %293 = vmatprep.subr.mxu0 0.0
        %294 = vmatpush1.msra.mxu0 0.0
        %295 = vmatprep.subr.mxu0 0.0
        %296 = vmatpush1.msra.mxu0 0.0
        %297 = vmatprep.subr.mxu0 0.0
        %298 = vmatpush1.msra.mxu0 0.0
        %299 = vmatprep.subr.mxu0 0.0
        %300 = vmatpush1.msra.mxu0 0.0
        %301 = vmatprep.subr.mxu0 0.0
        %302 = vmatpush1.msra.mxu0 0.0
        %303 = vmatprep.subr.mxu0 0.0
        %304 = vmatpush1.msra.mxu0 0.0
        %305 = vmatprep.subr.mxu0 0.0
        %306 = vmatpush1.msra.mxu0 0.0
        %307 = vmatprep.subr.mxu0 0.0
        %308 = vmatpush1.msra.mxu0 0.0
        %309 = vmatprep.mubr.f32.mxu0 0.0
        %310 = vmatmul.mubr.f32.gmra.mrb[0].mxu0 %v206
        %v311 = vpop.f32.mrb[0].mxu0
        %v312 = vadd.f32 %v243, %v311
        %v313 = vpop.f32.mrb[0].mxu0
        %314 = vmatprep.mubr.f32.mxu0 0.0
        %315 = vmatmul.mubr.f32.gmra.mrb[0].mxu0 %v207
        %v316 = vpop.f32.mrb[0].mxu0
        %v317 = vadd.f32 %v243, %v316
        %v318 = vpop.f32.mrb[0].mxu0
        %319 = vmatprep.mubr.f32.mxu0 0.0
        %320 = vmatmul.mubr.f32.gmra.mrb[0].mxu0 %v208
        %v321 = vpop.f32.mrb[0].mxu0
        %v322 = vadd.f32 %v243, %v321
        %v323 = vpop.f32.mrb[0].mxu0
        %324 = vmatprep.mubr.f32.mxu0 0.0
        %325 = vmatmul.mubr.f32.gmra.mrb[0].mxu0 %v209
        %v326 = vpop.f32.mrb[0].mxu0
        %v327 = vadd.f32 %v243, %v326
        %v328 = vpop.f32.mrb[0].mxu0
        %329 = vmatprep.mubr.f32.mxu0 0.0
        %330 = vmatmul.mubr.f32.gmra.mrb[0].mxu0 %v210
        %v331 = vpop.f32.mrb[0].mxu0
        %v332 = vadd.f32 %v243, %v331
        %v333 = vpop.f32.mrb[0].mxu0
        %334 = vmatprep.mubr.f32.mxu0 0.0
        %335 = vmatmul.mubr.f32.gmra.mrb[0].mxu0 %v211
        %v336 = vpop.f32.mrb[0].mxu0
        %v337 = vadd.f32 %v243, %v336
        %v338 = vpop.f32.mrb[0].mxu0
        %339 = vmatprep.mubr.f32.mxu0 0.0
        %340 = vmatmul.mubr.f32.gmra.mrb[0].mxu0 %v212
        %v341 = vpop.f32.mrb[0].mxu0
        %v342 = vadd.f32 %v243, %v341
        %v343 = vpop.f32.mrb[0].mxu0
        %344 = vmatprep.mubr.f32.mxu0 0.0
        %345 = vmatmul.mubr.f32.gmra.mrb[0].mxu0 %v213
        %v346 = vpop.f32.mrb[0].mxu0
        %v347 = vadd.f32 %v243, %v346
        %v348 = vpop.f32.mrb[0].mxu0
        %349 = vmatprep.mubr.f32.mxu0 0.0
        %350 = vmatmul.mubr.f32.gmra.mrb[0].mxu0 %v214
        %v351 = vpop.f32.mrb[0].mxu0
        %v352 = vadd.f32 %v243, %v351
        %v353 = vpop.f32.mrb[0].mxu0
        %354 = vmatprep.mubr.f32.mxu0 0.0
        %355 = vmatmul.mubr.f32.gmra.mrb[0].mxu0 %v215
        %v356 = vpop.f32.mrb[0].mxu0
        %v357 = vadd.f32 %v243, %v356
        %v358 = vpop.f32.mrb[0].mxu0
        %359 = vmatprep.mubr.f32.mxu0 0.0
        %360 = vmatmul.mubr.f32.gmra.mrb[0].mxu0 %v216
        %v361 = vpop.f32.mrb[0].mxu0
        %v362 = vadd.f32 %v243, %v361
        %v363 = vpop.f32.mrb[0].mxu0
        %364 = vmatprep.mubr.f32.mxu0 0.0
        %365 = vmatmul.mubr.f32.gmra.mrb[0].mxu0 %v217
        %v366 = vpop.f32.mrb[0].mxu0
        %v367 = vadd.f32 %v243, %v366
        %v368 = vpop.f32.mrb[0].mxu0
        %369 = vmatprep.mubr.f32.mxu0 0.0
        %370 = vmatmul.mubr.f32.gmra.mrb[0].mxu0 %v218
        %v371 = vpop.f32.mrb[0].mxu0
        %v372 = vadd.f32 %v243, %v371
        %v373 = vpop.f32.mrb[0].mxu0
        %374 = vmatprep.mubr.f32.mxu0 0.0
        %375 = vmatmul.mubr.f32.gmra.mrb[0].mxu0 %v219
        %v376 = vpop.f32.mrb[0].mxu0
        %v377 = vadd.f32 %v243, %v376
        %v378 = vpop.f32.mrb[0].mxu0
        %379 = vmatprep.mubr.f32.mxu0 0.0
        %380 = vmatmul.mubr.f32.gmra.mrb[0].mxu0 %v220
        %v381 = vpop.f32.mrb[0].mxu0
        %v382 = vadd.f32 %v243, %v381
        %v383 = vpop.f32.mrb[0].mxu0
        %384 = vmatprep.mubr.f32.mxu0 0.0
        %385 = vmatmul.mubr.f32.gmra.mrb[0].mxu0 %v221
        %v386 = vpop.f32.mrb[0].mxu0
        %v387 = vadd.f32 %v243, %v386
        %v388 = vpop.f32.mrb[0].mxu0
        %389 = vdwg.mxu0
        %v390 = vmul.f32 %v312, 30.0
        %v391 = vmul.f32 %v317, 30.0
        %v392 = vmul.f32 %v322, 30.0
        %v393 = vmul.f32 %v327, 30.0
        %v394 = vmul.f32 %v332, 30.0
        %v395 = vmul.f32 %v337, 30.0
        %v396 = vmul.f32 %v342, 30.0
        %v397 = vmul.f32 %v347, 30.0
        %v398 = vmul.f32 %v352, 30.0
        %v399 = vmul.f32 %v357, 30.0
        %v400 = vmul.f32 %v362, 30.0
        %v401 = vmul.f32 %v367, 30.0
        %v402 = vmul.f32 %v372, 30.0
        %v403 = vmul.f32 %v377, 30.0
        %v404 = vmul.f32 %v382, 30.0
        %v405 = vmul.f32 %v387, 30.0
        %v406 = vand.u32 2147483647, %v390
        %vm407 = vcmp.le.f32.partialorder %v406, 0.7853982
        %vm408 = vcmp.lt.s32.totalorder %v390, 0
        %v409 = vand.u32 %v390, 2139095040
        %v410 = vshrl.u32 %v409, 23
        %v411 = vsub.s32 %v410, 127
        %v412 = vand.u32 2147483647, %v390
        %v413 = vand.u32 %v412, 8388607
        %v414 = vor.u32 %v413, 8388608
        %v415 = vsub.s32 0, %v414
        %v416 = vadd.s32 %v411, 1
        %vm417 = vcmp.gt.s32.totalorder %v416, 0
        %v418 = vsel %vm417, %v416, 0
        %v419 = vshrl.u32 %v418, 5
        %v420 = vand.u32 %v418, 31
        %v421 = vsub.s32 32, %v420
        %v422 = vshrl.u32 683565275, %v421
        %v423 = vshll.u32 683565275, %v420
        %v424 = vshrl.u32 2475754826, %v421
        %v425 = vor.u32 %v423, %v424
        %v426 = vshll.u32 2475754826, %v420
        %v427 = vshrl.u32 2131351028, %v421
        %v428 = vor.u32 %v426, %v427
        %v429 = vshll.u32 2131351028, %v420
        %v430 = vshrl.u32 2102212464, %v421
        %v431 = vor.u32 %v429, %v430
        %v432 = vshll.u32 2102212464, %v420
        %v433 = vshrl.u32 920167782, %v421
        %v434 = vor.u32 %v432, %v433
        %v435 = vshll.u32 920167782, %v420
        %v436 = vshrl.u32 1326507024, %v421
        %v437 = vor.u32 %v435, %v436
        %vm438 = vcmp.lt.s32.totalorder %v419, 1
        %vm439 = vcmp.lt.s32.totalorder %v419, 2
        %vm440 = vcmp.lt.s32.totalorder %v419, 3
        %vm441 = vcmp.lt.s32.totalorder %v419, 4
        %v442 = vsel %vm438, %v422, %v425
        %v443 = vsel %vm441, %v431, 2102212464
        %v444 = vsel %vm440, %v428, %v443
        %v445 = vsel %vm439, %v442, %v444
        %v446 = vsel %vm438, %v425, %v428
        %v447 = vsel %vm441, %v434, 920167782
        %v448 = vsel %vm440, %v431, %v447
        %v449 = vsel %vm439, %v446, %v448
        %v450 = vsel %vm438, %v428, %v431
        %v451 = vsel %vm441, %v437, 1326507024
        %v452 = vsel %vm440, %v434, %v451
        %v453 = vsel %vm439, %v450, %v452
        %v454 = vshll.u32 %v414, 8
        %v455 = vmul.u32.u64.compose %v454, %v453
        %v456 = vextract.low.u32 %v455
        %v457 = vextract.high.u32 %v455
        %v458 = vmul.u32.u64.compose %v454, %v449
        %v459 = vextract.low.u32 %v458
        %v460 = vextract.high.u32 %v458
        %v461 = vmul.u32 %v454, %v445
        %v462 = vadd.s32 %v457, %v459
        %vm463 = vc.u32 %v457, %v459
        %v464 = vadd.s32 %v460, 1
        %v465 = vsel %vm463, %v464, %v460
        %v466 = vadd.s32 %v461, %v465
        %v467 = vadd.s32 %v466, 536870912
        %v468 = vshrl.u32 %v467, 30
        %v469 = vshll.u32 %v468, 30
        %v470 = vsub.s32 %v466, %v469
        %vm471 = vcmp.lt.s32.totalorder %v470, 0
        %v472 = vsub.s32 0, %v470
        %v473 = vsel %vm471, %v472, %v470
        %v474 = vclz %v473
        %v475 = vsub.s32 %v474, 2
        %vm476 = vcmp.gt.s32.totalorder 0, %v475
        %v477 = vsel %vm476, 0, %v475
        %v478 = vsub.s32 32, %v477
        %v479 = vshll.u32 %v470, %v477
        %v480 = vshrl.u32 %v462, %v478
        %v481 = vor.u32 %v479, %v480
        %v482 = vsub.s32 4294967266, %v477
        %v483 = vadd.s32 %v482, 127
        %v484 = vshll.u32 %v483, 23
        %v485 = vor.u32 4788187, %v484
        %v486 = vand.u32 2147483647, %v485
        %v488 = vcvt.s32.f32 %v481
        %v489 = vmul.f32 %v488, %v486
        %v490 = vxor.u32 %v489, 2147483648
        %v491 = vsel %vm408, %v490, %v489
        %v492 = vsub.s32 4, %v468
        %v493 = vsel %vm408, %v492, %v468
        %v494 = vsel %vm407, %v390, %v491
        %v495 = vsel %vm407, 0, %v493
        %v496 = vcosq.f32.pop %v494
        %v497 = vsinq.f32.pop %v494
        %vm498 = vweird.f32 %v390
        %v499 = vadd.s32 %v495, 3
        %v500 = vand.u32 %v499, 3
        %vm501 = vcmp.lt.s32.totalorder %v500, 2
        %vm502 = vcmp.eq.s32.totalorder %v500, 0
        %v503 = vxor.u32 %v497, 2147483648
        %v504 = vsel %vm502, %v496, %v503
        %vm505 = vcmp.eq.s32.totalorder %v500, 2
        %v506 = vxor.u32 %v496, 2147483648
        %v507 = vsel %vm505, %v506, %v497
        %v508 = vsel %vm501, %v504, %v507
        %v509 = vsel %vm498, nan, %v508
        %v510 = vand.u32 2147483647, %v391
        %vm511 = vcmp.le.f32.partialorder %v510, 0.7853982
        %vm512 = vcmp.lt.s32.totalorder %v391, 0
        %v513 = vand.u32 %v391, 2139095040
        %v514 = vshrl.u32 %v513, 23
        %v515 = vsub.s32 %v514, 127
        %v516 = vand.u32 2147483647, %v391
        %v517 = vand.u32 %v516, 8388607
        %v518 = vor.u32 %v517, 8388608
        %v519 = vsub.s32 0, %v518
        %v520 = vadd.s32 %v515, 1
        %vm521 = vcmp.gt.s32.totalorder %v520, 0
        %v522 = vsel %vm521, %v520, 0
        %v523 = vshrl.u32 %v522, 5
        %v524 = vand.u32 %v522, 31
        %v525 = vsub.s32 32, %v524
        %v526 = vshrl.u32 683565275, %v525
        %v527 = vshll.u32 683565275, %v524
        %v528 = vshrl.u32 2475754826, %v525
        %v529 = vor.u32 %v527, %v528
        %v530 = vshll.u32 2475754826, %v524
        %v531 = vshrl.u32 2131351028, %v525
        %v532 = vor.u32 %v530, %v531
        %v533 = vshll.u32 2131351028, %v524
        %v534 = vshrl.u32 2102212464, %v525
        %v535 = vor.u32 %v533, %v534
        %v536 = vshll.u32 2102212464, %v524
        %v537 = vshrl.u32 920167782, %v525
        %v538 = vor.u32 %v536, %v537
        %v539 = vshll.u32 920167782, %v524
        %v540 = vshrl.u32 1326507024, %v525
        %v541 = vor.u32 %v539, %v540
        %vm542 = vcmp.lt.s32.totalorder %v523, 1
        %vm543 = vcmp.lt.s32.totalorder %v523, 2
        %vm544 = vcmp.lt.s32.totalorder %v523, 3
        %vm545 = vcmp.lt.s32.totalorder %v523, 4
        %v546 = vsel %vm542, %v526, %v529
        %v547 = vsel %vm545, %v535, 2102212464
        %v548 = vsel %vm544, %v532, %v547
        %v549 = vsel %vm543, %v546, %v548
        %v550 = vsel %vm542, %v529, %v532
        %v551 = vsel %vm545, %v538, 920167782
        %v552 = vsel %vm544, %v535, %v551
        %v553 = vsel %vm543, %v550, %v552
        %v554 = vsel %vm542, %v532, %v535
        %v555 = vsel %vm545, %v541, 1326507024
        %v556 = vsel %vm544, %v538, %v555
        %v557 = vsel %vm543, %v554, %v556
        %v558 = vshll.u32 %v518, 8
        %v559 = vmul.u32.u64.compose %v558, %v557
        %v560 = vextract.low.u32 %v559
        %v561 = vextract.high.u32 %v559
        %v562 = vmul.u32.u64.compose %v558, %v553
        %v563 = vextract.low.u32 %v562
        %v564 = vextract.high.u32 %v562
        %v565 = vmul.u32 %v558, %v549
        %v566 = vadd.s32 %v561, %v563
        %vm567 = vc.u32 %v561, %v563
        %v568 = vadd.s32 %v564, 1
        %v569 = vsel %vm567, %v568, %v564
        %v570 = vadd.s32 %v565, %v569
        %v571 = vadd.s32 %v570, 536870912
        %v572 = vshrl.u32 %v571, 30
        %v573 = vshll.u32 %v572, 30
        %v574 = vsub.s32 %v570, %v573
        %vm575 = vcmp.lt.s32.totalorder %v574, 0
        %v576 = vsub.s32 0, %v574
        %v577 = vsel %vm575, %v576, %v574
        %v578 = vclz %v577
        %v579 = vsub.s32 %v578, 2
        %vm580 = vcmp.gt.s32.totalorder 0, %v579
        %v581 = vsel %vm580, 0, %v579
        %v582 = vsub.s32 32, %v581
        %v583 = vshll.u32 %v574, %v581
        %v584 = vshrl.u32 %v566, %v582
        %v585 = vor.u32 %v583, %v584
        %v586 = vsub.s32 4294967266, %v581
        %v587 = vadd.s32 %v586, 127
        %v588 = vshll.u32 %v587, 23
        %v589 = vor.u32 4788187, %v588
        %v590 = vand.u32 2147483647, %v589
        %v592 = vcvt.s32.f32 %v585
        %v593 = vmul.f32 %v592, %v590
        %v594 = vxor.u32 %v593, 2147483648
        %v595 = vsel %vm512, %v594, %v593
        %v596 = vsub.s32 4, %v572
        %v597 = vsel %vm512, %v596, %v572
        %v598 = vsel %vm511, %v391, %v595
        %v599 = vsel %vm511, 0, %v597
        %v600 = vcosq.f32.pop %v598
        %v601 = vsinq.f32.pop %v598
        %vm602 = vweird.f32 %v391
        %v603 = vadd.s32 %v599, 3
        %v604 = vand.u32 %v603, 3
        %vm605 = vcmp.lt.s32.totalorder %v604, 2
        %vm606 = vcmp.eq.s32.totalorder %v604, 0
        %v607 = vxor.u32 %v601, 2147483648
        %v608 = vsel %vm606, %v600, %v607
        %vm609 = vcmp.eq.s32.totalorder %v604, 2
        %v610 = vxor.u32 %v600, 2147483648
        %v611 = vsel %vm609, %v610, %v601
        %v612 = vsel %vm605, %v608, %v611
        %v613 = vsel %vm602, nan, %v612
        %v614 = vand.u32 2147483647, %v392
        %vm615 = vcmp.le.f32.partialorder %v614, 0.7853982
        %vm616 = vcmp.lt.s32.totalorder %v392, 0
        %v617 = vand.u32 %v392, 2139095040
        %v618 = vshrl.u32 %v617, 23
        %v619 = vsub.s32 %v618, 127
        %v620 = vand.u32 2147483647, %v392
        %v621 = vand.u32 %v620, 8388607
        %v622 = vor.u32 %v621, 8388608
        %v623 = vsub.s32 0, %v622
        %v624 = vadd.s32 %v619, 1
        %vm625 = vcmp.gt.s32.totalorder %v624, 0
        %v626 = vsel %vm625, %v624, 0
        %v627 = vshrl.u32 %v626, 5
        %v628 = vand.u32 %v626, 31
        %v629 = vsub.s32 32, %v628
        %v630 = vshrl.u32 683565275, %v629
        %v631 = vshll.u32 683565275, %v628
        %v632 = vshrl.u32 2475754826, %v629
        %v633 = vor.u32 %v631, %v632
        %v634 = vshll.u32 2475754826, %v628
        %v635 = vshrl.u32 2131351028, %v629
        %v636 = vor.u32 %v634, %v635
        %v637 = vshll.u32 2131351028, %v628
        %v638 = vshrl.u32 2102212464, %v629
        %v639 = vor.u32 %v637, %v638
        %v640 = vshll.u32 2102212464, %v628
        %v641 = vshrl.u32 920167782, %v629
        %v642 = vor.u32 %v640, %v641
        %v643 = vshll.u32 920167782, %v628
        %v644 = vshrl.u32 1326507024, %v629
        %v645 = vor.u32 %v643, %v644
        %vm646 = vcmp.lt.s32.totalorder %v627, 1
        %vm647 = vcmp.lt.s32.totalorder %v627, 2
        %vm648 = vcmp.lt.s32.totalorder %v627, 3
        %vm649 = vcmp.lt.s32.totalorder %v627, 4
        %v650 = vsel %vm646, %v630, %v633
        %v651 = vsel %vm649, %v639, 2102212464
        %v652 = vsel %vm648, %v636, %v651
        %v653 = vsel %vm647, %v650, %v652
        %v654 = vsel %vm646, %v633, %v636
        %v655 = vsel %vm649, %v642, 920167782
        %v656 = vsel %vm648, %v639, %v655
        %v657 = vsel %vm647, %v654, %v656
        %v658 = vsel %vm646, %v636, %v639
        %v659 = vsel %vm649, %v645, 1326507024
        %v660 = vsel %vm648, %v642, %v659
        %v661 = vsel %vm647, %v658, %v660
        %v662 = vshll.u32 %v622, 8
        %v663 = vmul.u32.u64.compose %v662, %v661
        %v664 = vextract.low.u32 %v663
        %v665 = vextract.high.u32 %v663
        %v666 = vmul.u32.u64.compose %v662, %v657
        %v667 = vextract.low.u32 %v666
        %v668 = vextract.high.u32 %v666
        %v669 = vmul.u32 %v662, %v653
        %v670 = vadd.s32 %v665, %v667
        %vm671 = vc.u32 %v665, %v667
        %v672 = vadd.s32 %v668, 1
        %v673 = vsel %vm671, %v672, %v668
        %v674 = vadd.s32 %v669, %v673
        %v675 = vadd.s32 %v674, 536870912
        %v676 = vshrl.u32 %v675, 30
        %v677 = vshll.u32 %v676, 30
        %v678 = vsub.s32 %v674, %v677
        %vm679 = vcmp.lt.s32.totalorder %v678, 0
        %v680 = vsub.s32 0, %v678
        %v681 = vsel %vm679, %v680, %v678
        %v682 = vclz %v681
        %v683 = vsub.s32 %v682, 2
        %vm684 = vcmp.gt.s32.totalorder 0, %v683
        %v685 = vsel %vm684, 0, %v683
        %v686 = vsub.s32 32, %v685
        %v687 = vshll.u32 %v678, %v685
        %v688 = vshrl.u32 %v670, %v686
        %v689 = vor.u32 %v687, %v688
        %v690 = vsub.s32 4294967266, %v685
        %v691 = vadd.s32 %v690, 127
        %v692 = vshll.u32 %v691, 23
        %v693 = vor.u32 4788187, %v692
        %v694 = vand.u32 2147483647, %v693
        %v696 = vcvt.s32.f32 %v689
        %v697 = vmul.f32 %v696, %v694
        %v698 = vxor.u32 %v697, 2147483648
        %v699 = vsel %vm616, %v698, %v697
        %v700 = vsub.s32 4, %v676
        %v701 = vsel %vm616, %v700, %v676
        %v702 = vsel %vm615, %v392, %v699
        %v703 = vsel %vm615, 0, %v701
        %v704 = vcosq.f32.pop %v702
        %v705 = vsinq.f32.pop %v702
        %vm706 = vweird.f32 %v392
        %v707 = vadd.s32 %v703, 3
        %v708 = vand.u32 %v707, 3
        %vm709 = vcmp.lt.s32.totalorder %v708, 2
        %vm710 = vcmp.eq.s32.totalorder %v708, 0
        %v711 = vxor.u32 %v705, 2147483648
        %v712 = vsel %vm710, %v704, %v711
        %vm713 = vcmp.eq.s32.totalorder %v708, 2
        %v714 = vxor.u32 %v704, 2147483648
        %v715 = vsel %vm713, %v714, %v705
        %v716 = vsel %vm709, %v712, %v715
        %v717 = vsel %vm706, nan, %v716
        %v718 = vand.u32 2147483647, %v393
        %vm719 = vcmp.le.f32.partialorder %v718, 0.7853982
        %vm720 = vcmp.lt.s32.totalorder %v393, 0
        %v721 = vand.u32 %v393, 2139095040
        %v722 = vshrl.u32 %v721, 23
        %v723 = vsub.s32 %v722, 127
        %v724 = vand.u32 2147483647, %v393
        %v725 = vand.u32 %v724, 8388607
        %v726 = vor.u32 %v725, 8388608
        %v727 = vsub.s32 0, %v726
        %v728 = vadd.s32 %v723, 1
        %vm729 = vcmp.gt.s32.totalorder %v728, 0
        %v730 = vsel %vm729, %v728, 0
        %v731 = vshrl.u32 %v730, 5
        %v732 = vand.u32 %v730, 31
        %v733 = vsub.s32 32, %v732
        %v734 = vshrl.u32 683565275, %v733
        %v735 = vshll.u32 683565275, %v732
        %v736 = vshrl.u32 2475754826, %v733
        %v737 = vor.u32 %v735, %v736
        %v738 = vshll.u32 2475754826, %v732
        %v739 = vshrl.u32 2131351028, %v733
        %v740 = vor.u32 %v738, %v739
        %v741 = vshll.u32 2131351028, %v732
        %v742 = vshrl.u32 2102212464, %v733
        %v743 = vor.u32 %v741, %v742
        %v744 = vshll.u32 2102212464, %v732
        %v745 = vshrl.u32 920167782, %v733
        %v746 = vor.u32 %v744, %v745
        %v747 = vshll.u32 920167782, %v732
        %v748 = vshrl.u32 1326507024, %v733
        %v749 = vor.u32 %v747, %v748
        %vm750 = vcmp.lt.s32.totalorder %v731, 1
        %vm751 = vcmp.lt.s32.totalorder %v731, 2
        %vm752 = vcmp.lt.s32.totalorder %v731, 3
        %vm753 = vcmp.lt.s32.totalorder %v731, 4
        %v754 = vsel %vm750, %v734, %v737
        %v755 = vsel %vm753, %v743, 2102212464
        %v756 = vsel %vm752, %v740, %v755
        %v757 = vsel %vm751, %v754, %v756
        %v758 = vsel %vm750, %v737, %v740
        %v759 = vsel %vm753, %v746, 920167782
        %v760 = vsel %vm752, %v743, %v759
        %v761 = vsel %vm751, %v758, %v760
        %v762 = vsel %vm750, %v740, %v743
        %v763 = vsel %vm753, %v749, 1326507024
        %v764 = vsel %vm752, %v746, %v763
        %v765 = vsel %vm751, %v762, %v764
        %v766 = vshll.u32 %v726, 8
        %v767 = vmul.u32.u64.compose %v766, %v765
        %v768 = vextract.low.u32 %v767
        %v769 = vextract.high.u32 %v767
        %v770 = vmul.u32.u64.compose %v766, %v761
        %v771 = vextract.low.u32 %v770
        %v772 = vextract.high.u32 %v770
        %v773 = vmul.u32 %v766, %v757
        %v774 = vadd.s32 %v769, %v771
        %vm775 = vc.u32 %v769, %v771
        %v776 = vadd.s32 %v772, 1
        %v777 = vsel %vm775, %v776, %v772
        %v778 = vadd.s32 %v773, %v777
        %v779 = vadd.s32 %v778, 536870912
        %v780 = vshrl.u32 %v779, 30
        %v781 = vshll.u32 %v780, 30
        %v782 = vsub.s32 %v778, %v781
        %vm783 = vcmp.lt.s32.totalorder %v782, 0
        %v784 = vsub.s32 0, %v782
        %v785 = vsel %vm783, %v784, %v782
        %v786 = vclz %v785
        %v787 = vsub.s32 %v786, 2
        %vm788 = vcmp.gt.s32.totalorder 0, %v787
        %v789 = vsel %vm788, 0, %v787
        %v790 = vsub.s32 32, %v789
        %v791 = vshll.u32 %v782, %v789
        %v792 = vshrl.u32 %v774, %v790
        %v793 = vor.u32 %v791, %v792
        %v794 = vsub.s32 4294967266, %v789
        %v795 = vadd.s32 %v794, 127
        %v796 = vshll.u32 %v795, 23
        %v797 = vor.u32 4788187, %v796
        %v798 = vand.u32 2147483647, %v797
        %v800 = vcvt.s32.f32 %v793
        %v801 = vmul.f32 %v800, %v798
        %v802 = vxor.u32 %v801, 2147483648
        %v803 = vsel %vm720, %v802, %v801
        %v804 = vsub.s32 4, %v780
        %v805 = vsel %vm720, %v804, %v780
        %v806 = vsel %vm719, %v393, %v803
        %v807 = vsel %vm719, 0, %v805
        %v808 = vcosq.f32.pop %v806
        %v809 = vsinq.f32.pop %v806
        %vm810 = vweird.f32 %v393
        %v811 = vadd.s32 %v807, 3
        %v812 = vand.u32 %v811, 3
        %vm813 = vcmp.lt.s32.totalorder %v812, 2
        %vm814 = vcmp.eq.s32.totalorder %v812, 0
        %v815 = vxor.u32 %v809, 2147483648
        %v816 = vsel %vm814, %v808, %v815
        %vm817 = vcmp.eq.s32.totalorder %v812, 2
        %v818 = vxor.u32 %v808, 2147483648
        %v819 = vsel %vm817, %v818, %v809
        %v820 = vsel %vm813, %v816, %v819
        %v821 = vsel %vm810, nan, %v820
        %v822 = vand.u32 2147483647, %v394
        %vm823 = vcmp.le.f32.partialorder %v822, 0.7853982
        %vm824 = vcmp.lt.s32.totalorder %v394, 0
        %v825 = vand.u32 %v394, 2139095040
        %v826 = vshrl.u32 %v825, 23
        %v827 = vsub.s32 %v826, 127
        %v828 = vand.u32 2147483647, %v394
        %v829 = vand.u32 %v828, 8388607
        %v830 = vor.u32 %v829, 8388608
        %v831 = vsub.s32 0, %v830
        %v832 = vadd.s32 %v827, 1
        %vm833 = vcmp.gt.s32.totalorder %v832, 0
        %v834 = vsel %vm833, %v832, 0
        %v835 = vshrl.u32 %v834, 5
        %v836 = vand.u32 %v834, 31
        %v837 = vsub.s32 32, %v836
        %v838 = vshrl.u32 683565275, %v837
        %v839 = vshll.u32 683565275, %v836
        %v840 = vshrl.u32 2475754826, %v837
        %v841 = vor.u32 %v839, %v840
        %v842 = vshll.u32 2475754826, %v836
        %v843 = vshrl.u32 2131351028, %v837
        %v844 = vor.u32 %v842, %v843
        %v845 = vshll.u32 2131351028, %v836
        %v846 = vshrl.u32 2102212464, %v837
        %v847 = vor.u32 %v845, %v846
        %v848 = vshll.u32 2102212464, %v836
        %v849 = vshrl.u32 920167782, %v837
        %v850 = vor.u32 %v848, %v849
        %v851 = vshll.u32 920167782, %v836
        %v852 = vshrl.u32 1326507024, %v837
        %v853 = vor.u32 %v851, %v852
        %vm854 = vcmp.lt.s32.totalorder %v835, 1
        %vm855 = vcmp.lt.s32.totalorder %v835, 2
        %vm856 = vcmp.lt.s32.totalorder %v835, 3
        %vm857 = vcmp.lt.s32.totalorder %v835, 4
        %v858 = vsel %vm854, %v838, %v841
        %v859 = vsel %vm857, %v847, 2102212464
        %v860 = vsel %vm856, %v844, %v859
        %v861 = vsel %vm855, %v858, %v860
        %v862 = vsel %vm854, %v841, %v844
        %v863 = vsel %vm857, %v850, 920167782
        %v864 = vsel %vm856, %v847, %v863
        %v865 = vsel %vm855, %v862, %v864
        %v866 = vsel %vm854, %v844, %v847
        %v867 = vsel %vm857, %v853, 1326507024
        %v868 = vsel %vm856, %v850, %v867
        %v869 = vsel %vm855, %v866, %v868
        %v870 = vshll.u32 %v830, 8
        %v871 = vmul.u32.u64.compose %v870, %v869
        %v872 = vextract.low.u32 %v871
        %v873 = vextract.high.u32 %v871
        %v874 = vmul.u32.u64.compose %v870, %v865
        %v875 = vextract.low.u32 %v874
        %v876 = vextract.high.u32 %v874
        %v877 = vmul.u32 %v870, %v861
        %v878 = vadd.s32 %v873, %v875
        %vm879 = vc.u32 %v873, %v875
        %v880 = vadd.s32 %v876, 1
        %v881 = vsel %vm879, %v880, %v876
        %v882 = vadd.s32 %v877, %v881
        %v883 = vadd.s32 %v882, 536870912
        %v884 = vshrl.u32 %v883, 30
        %v885 = vshll.u32 %v884, 30
        %v886 = vsub.s32 %v882, %v885
        %vm887 = vcmp.lt.s32.totalorder %v886, 0
        %v888 = vsub.s32 0, %v886
        %v889 = vsel %vm887, %v888, %v886
        %v890 = vclz %v889
        %v891 = vsub.s32 %v890, 2
        %vm892 = vcmp.gt.s32.totalorder 0, %v891
        %v893 = vsel %vm892, 0, %v891
        %v894 = vsub.s32 32, %v893
        %v895 = vshll.u32 %v886, %v893
        %v896 = vshrl.u32 %v878, %v894
        %v897 = vor.u32 %v895, %v896
        %v898 = vsub.s32 4294967266, %v893
        %v899 = vadd.s32 %v898, 127
        %v900 = vshll.u32 %v899, 23
        %v901 = vor.u32 4788187, %v900
        %v902 = vand.u32 2147483647, %v901
        %v904 = vcvt.s32.f32 %v897
        %v905 = vmul.f32 %v904, %v902
        %v906 = vxor.u32 %v905, 2147483648
        %v907 = vsel %vm824, %v906, %v905
        %v908 = vsub.s32 4, %v884
        %v909 = vsel %vm824, %v908, %v884
        %v910 = vsel %vm823, %v394, %v907
        %v911 = vsel %vm823, 0, %v909
        %v912 = vcosq.f32.pop %v910
        %v913 = vsinq.f32.pop %v910
        %vm914 = vweird.f32 %v394
        %v915 = vadd.s32 %v911, 3
        %v916 = vand.u32 %v915, 3
        %vm917 = vcmp.lt.s32.totalorder %v916, 2
        %vm918 = vcmp.eq.s32.totalorder %v916, 0
        %v919 = vxor.u32 %v913, 2147483648
        %v920 = vsel %vm918, %v912, %v919
        %vm921 = vcmp.eq.s32.totalorder %v916, 2
        %v922 = vxor.u32 %v912, 2147483648
        %v923 = vsel %vm921, %v922, %v913
        %v924 = vsel %vm917, %v920, %v923
        %v925 = vsel %vm914, nan, %v924
        %v926 = vand.u32 2147483647, %v395
        %vm927 = vcmp.le.f32.partialorder %v926, 0.7853982
        %vm928 = vcmp.lt.s32.totalorder %v395, 0
        %v929 = vand.u32 %v395, 2139095040
        %v930 = vshrl.u32 %v929, 23
        %v931 = vsub.s32 %v930, 127
        %v932 = vand.u32 2147483647, %v395
        %v933 = vand.u32 %v932, 8388607
        %v934 = vor.u32 %v933, 8388608
        %v935 = vsub.s32 0, %v934
        %v936 = vadd.s32 %v931, 1
        %vm937 = vcmp.gt.s32.totalorder %v936, 0
        %v938 = vsel %vm937, %v936, 0
        %v939 = vshrl.u32 %v938, 5
        %v940 = vand.u32 %v938, 31
        %v941 = vsub.s32 32, %v940
        %v942 = vshrl.u32 683565275, %v941
        %v943 = vshll.u32 683565275, %v940
        %v944 = vshrl.u32 2475754826, %v941
        %v945 = vor.u32 %v943, %v944
        %v946 = vshll.u32 2475754826, %v940
        %v947 = vshrl.u32 2131351028, %v941
        %v948 = vor.u32 %v946, %v947
        %v949 = vshll.u32 2131351028, %v940
        %v950 = vshrl.u32 2102212464, %v941
        %v951 = vor.u32 %v949, %v950
        %v952 = vshll.u32 2102212464, %v940
        %v953 = vshrl.u32 920167782, %v941
        %v954 = vor.u32 %v952, %v953
        %v955 = vshll.u32 920167782, %v940
        %v956 = vshrl.u32 1326507024, %v941
        %v957 = vor.u32 %v955, %v956
        %vm958 = vcmp.lt.s32.totalorder %v939, 1
        %vm959 = vcmp.lt.s32.totalorder %v939, 2
        %vm960 = vcmp.lt.s32.totalorder %v939, 3
        %vm961 = vcmp.lt.s32.totalorder %v939, 4
        %v962 = vsel %vm958, %v942, %v945
        %v963 = vsel %vm961, %v951, 2102212464
        %v964 = vsel %vm960, %v948, %v963
        %v965 = vsel %vm959, %v962, %v964
        %v966 = vsel %vm958, %v945, %v948
        %v967 = vsel %vm961, %v954, 920167782
        %v968 = vsel %vm960, %v951, %v967
        %v969 = vsel %vm959, %v966, %v968
        %v970 = vsel %vm958, %v948, %v951
        %v971 = vsel %vm961, %v957, 1326507024
        %v972 = vsel %vm960, %v954, %v971
        %v973 = vsel %vm959, %v970, %v972
        %v974 = vshll.u32 %v934, 8
        %v975 = vmul.u32.u64.compose %v974, %v973
        %v976 = vextract.low.u32 %v975
        %v977 = vextract.high.u32 %v975
        %v978 = vmul.u32.u64.compose %v974, %v969
        %v979 = vextract.low.u32 %v978
        %v980 = vextract.high.u32 %v978
        %v981 = vmul.u32 %v974, %v965
        %v982 = vadd.s32 %v977, %v979
        %vm983 = vc.u32 %v977, %v979
        %v984 = vadd.s32 %v980, 1
        %v985 = vsel %vm983, %v984, %v980
        %v986 = vadd.s32 %v981, %v985
        %v987 = vadd.s32 %v986, 536870912
        %v988 = vshrl.u32 %v987, 30
        %v989 = vshll.u32 %v988, 30
        %v990 = vsub.s32 %v986, %v989
        %vm991 = vcmp.lt.s32.totalorder %v990, 0
        %v992 = vsub.s32 0, %v990
        %v993 = vsel %vm991, %v992, %v990
        %v994 = vclz %v993
        %v995 = vsub.s32 %v994, 2
        %vm996 = vcmp.gt.s32.totalorder 0, %v995
        %v997 = vsel %vm996, 0, %v995
        %v998 = vsub.s32 32, %v997
        %v999 = vshll.u32 %v990, %v997
        %v1000 = vshrl.u32 %v982, %v998
        %v1001 = vor.u32 %v999, %v1000
        %v1002 = vsub.s32 4294967266, %v997
        %v1003 = vadd.s32 %v1002, 127
        %v1004 = vshll.u32 %v1003, 23
        %v1005 = vor.u32 4788187, %v1004
        %v1006 = vand.u32 2147483647, %v1005
        %v1008 = vcvt.s32.f32 %v1001
        %v1009 = vmul.f32 %v1008, %v1006
        %v1010 = vxor.u32 %v1009, 2147483648
        %v1011 = vsel %vm928, %v1010, %v1009
        %v1012 = vsub.s32 4, %v988
        %v1013 = vsel %vm928, %v1012, %v988
        %v1014 = vsel %vm927, %v395, %v1011
        %v1015 = vsel %vm927, 0, %v1013
        %v1016 = vcosq.f32.pop %v1014
        %v1017 = vsinq.f32.pop %v1014
        %vm1018 = vweird.f32 %v395
        %v1019 = vadd.s32 %v1015, 3
        %v1020 = vand.u32 %v1019, 3
        %vm1021 = vcmp.lt.s32.totalorder %v1020, 2
        %vm1022 = vcmp.eq.s32.totalorder %v1020, 0
        %v1023 = vxor.u32 %v1017, 2147483648
        %v1024 = vsel %vm1022, %v1016, %v1023
        %vm1025 = vcmp.eq.s32.totalorder %v1020, 2
        %v1026 = vxor.u32 %v1016, 2147483648
        %v1027 = vsel %vm1025, %v1026, %v1017
        %v1028 = vsel %vm1021, %v1024, %v1027
        %v1029 = vsel %vm1018, nan, %v1028
        %v1030 = vand.u32 2147483647, %v396
        %vm1031 = vcmp.le.f32.partialorder %v1030, 0.7853982
        %vm1032 = vcmp.lt.s32.totalorder %v396, 0
        %v1033 = vand.u32 %v396, 2139095040
        %v1034 = vshrl.u32 %v1033, 23
        %v1035 = vsub.s32 %v1034, 127
        %v1036 = vand.u32 2147483647, %v396
        %v1037 = vand.u32 %v1036, 8388607
        %v1038 = vor.u32 %v1037, 8388608
        %v1039 = vsub.s32 0, %v1038
        %v1040 = vadd.s32 %v1035, 1
        %vm1041 = vcmp.gt.s32.totalorder %v1040, 0
        %v1042 = vsel %vm1041, %v1040, 0
        %v1043 = vshrl.u32 %v1042, 5
        %v1044 = vand.u32 %v1042, 31
        %v1045 = vsub.s32 32, %v1044
        %v1046 = vshrl.u32 683565275, %v1045
        %v1047 = vshll.u32 683565275, %v1044
        %v1048 = vshrl.u32 2475754826, %v1045
        %v1049 = vor.u32 %v1047, %v1048
        %v1050 = vshll.u32 2475754826, %v1044
        %v1051 = vshrl.u32 2131351028, %v1045
        %v1052 = vor.u32 %v1050, %v1051
        %v1053 = vshll.u32 2131351028, %v1044
        %v1054 = vshrl.u32 2102212464, %v1045
        %v1055 = vor.u32 %v1053, %v1054
        %v1056 = vshll.u32 2102212464, %v1044
        %v1057 = vshrl.u32 920167782, %v1045
        %v1058 = vor.u32 %v1056, %v1057
        %v1059 = vshll.u32 920167782, %v1044
        %v1060 = vshrl.u32 1326507024, %v1045
        %v1061 = vor.u32 %v1059, %v1060
        %vm1062 = vcmp.lt.s32.totalorder %v1043, 1
        %vm1063 = vcmp.lt.s32.totalorder %v1043, 2
        %vm1064 = vcmp.lt.s32.totalorder %v1043, 3
        %vm1065 = vcmp.lt.s32.totalorder %v1043, 4
        %v1066 = vsel %vm1062, %v1046, %v1049
        %v1067 = vsel %vm1065, %v1055, 2102212464
        %v1068 = vsel %vm1064, %v1052, %v1067
        %v1069 = vsel %vm1063, %v1066, %v1068
        %v1070 = vsel %vm1062, %v1049, %v1052
        %v1071 = vsel %vm1065, %v1058, 920167782
        %v1072 = vsel %vm1064, %v1055, %v1071
        %v1073 = vsel %vm1063, %v1070, %v1072
        %v1074 = vsel %vm1062, %v1052, %v1055
        %v1075 = vsel %vm1065, %v1061, 1326507024
        %v1076 = vsel %vm1064, %v1058, %v1075
        %v1077 = vsel %vm1063, %v1074, %v1076
        %v1078 = vshll.u32 %v1038, 8
        %v1079 = vmul.u32.u64.compose %v1078, %v1077
        %v1080 = vextract.low.u32 %v1079
        %v1081 = vextract.high.u32 %v1079
        %v1082 = vmul.u32.u64.compose %v1078, %v1073
        %v1083 = vextract.low.u32 %v1082
        %v1084 = vextract.high.u32 %v1082
        %v1085 = vmul.u32 %v1078, %v1069
        %v1086 = vadd.s32 %v1081, %v1083
        %vm1087 = vc.u32 %v1081, %v1083
        %v1088 = vadd.s32 %v1084, 1
        %v1089 = vsel %vm1087, %v1088, %v1084
        %v1090 = vadd.s32 %v1085, %v1089
        %v1091 = vadd.s32 %v1090, 536870912
        %v1092 = vshrl.u32 %v1091, 30
        %v1093 = vshll.u32 %v1092, 30
        %v1094 = vsub.s32 %v1090, %v1093
        %vm1095 = vcmp.lt.s32.totalorder %v1094, 0
        %v1096 = vsub.s32 0, %v1094
        %v1097 = vsel %vm1095, %v1096, %v1094
        %v1098 = vclz %v1097
        %v1099 = vsub.s32 %v1098, 2
        %vm1100 = vcmp.gt.s32.totalorder 0, %v1099
        %v1101 = vsel %vm1100, 0, %v1099
        %v1102 = vsub.s32 32, %v1101
        %v1103 = vshll.u32 %v1094, %v1101
        %v1104 = vshrl.u32 %v1086, %v1102
        %v1105 = vor.u32 %v1103, %v1104
        %v1106 = vsub.s32 4294967266, %v1101
        %v1107 = vadd.s32 %v1106, 127
        %v1108 = vshll.u32 %v1107, 23
        %v1109 = vor.u32 4788187, %v1108
        %v1110 = vand.u32 2147483647, %v1109
        %v1112 = vcvt.s32.f32 %v1105
        %v1113 = vmul.f32 %v1112, %v1110
        %v1114 = vxor.u32 %v1113, 2147483648
        %v1115 = vsel %vm1032, %v1114, %v1113
        %v1116 = vsub.s32 4, %v1092
        %v1117 = vsel %vm1032, %v1116, %v1092
        %v1118 = vsel %vm1031, %v396, %v1115
        %v1119 = vsel %vm1031, 0, %v1117
        %v1120 = vcosq.f32.pop %v1118
        %v1121 = vsinq.f32.pop %v1118
        %vm1122 = vweird.f32 %v396
        %v1123 = vadd.s32 %v1119, 3
        %v1124 = vand.u32 %v1123, 3
        %vm1125 = vcmp.lt.s32.totalorder %v1124, 2
        %vm1126 = vcmp.eq.s32.totalorder %v1124, 0
        %v1127 = vxor.u32 %v1121, 2147483648
        %v1128 = vsel %vm1126, %v1120, %v1127
        %vm1129 = vcmp.eq.s32.totalorder %v1124, 2
        %v1130 = vxor.u32 %v1120, 2147483648
        %v1131 = vsel %vm1129, %v1130, %v1121
        %v1132 = vsel %vm1125, %v1128, %v1131
        %v1133 = vsel %vm1122, nan, %v1132
        %v1134 = vand.u32 2147483647, %v397
        %vm1135 = vcmp.le.f32.partialorder %v1134, 0.7853982
        %vm1136 = vcmp.lt.s32.totalorder %v397, 0
        %v1137 = vand.u32 %v397, 2139095040
        %v1138 = vshrl.u32 %v1137, 23
        %v1139 = vsub.s32 %v1138, 127
        %v1140 = vand.u32 2147483647, %v397
        %v1141 = vand.u32 %v1140, 8388607
        %v1142 = vor.u32 %v1141, 8388608
        %v1143 = vsub.s32 0, %v1142
        %v1144 = vadd.s32 %v1139, 1
        %vm1145 = vcmp.gt.s32.totalorder %v1144, 0
        %v1146 = vsel %vm1145, %v1144, 0
        %v1147 = vshrl.u32 %v1146, 5
        %v1148 = vand.u32 %v1146, 31
        %v1149 = vsub.s32 32, %v1148
        %v1150 = vshrl.u32 683565275, %v1149
        %v1151 = vshll.u32 683565275, %v1148
        %v1152 = vshrl.u32 2475754826, %v1149
        %v1153 = vor.u32 %v1151, %v1152
        %v1154 = vshll.u32 2475754826, %v1148
        %v1155 = vshrl.u32 2131351028, %v1149
        %v1156 = vor.u32 %v1154, %v1155
        %v1157 = vshll.u32 2131351028, %v1148
        %v1158 = vshrl.u32 2102212464, %v1149
        %v1159 = vor.u32 %v1157, %v1158
        %v1160 = vshll.u32 2102212464, %v1148
        %v1161 = vshrl.u32 920167782, %v1149
        %v1162 = vor.u32 %v1160, %v1161
        %v1163 = vshll.u32 920167782, %v1148
        %v1164 = vshrl.u32 1326507024, %v1149
        %v1165 = vor.u32 %v1163, %v1164
        %vm1166 = vcmp.lt.s32.totalorder %v1147, 1
        %vm1167 = vcmp.lt.s32.totalorder %v1147, 2
        %vm1168 = vcmp.lt.s32.totalorder %v1147, 3
        %vm1169 = vcmp.lt.s32.totalorder %v1147, 4
        %v1170 = vsel %vm1166, %v1150, %v1153
        %v1171 = vsel %vm1169, %v1159, 2102212464
        %v1172 = vsel %vm1168, %v1156, %v1171
        %v1173 = vsel %vm1167, %v1170, %v1172
        %v1174 = vsel %vm1166, %v1153, %v1156
        %v1175 = vsel %vm1169, %v1162, 920167782
        %v1176 = vsel %vm1168, %v1159, %v1175
        %v1177 = vsel %vm1167, %v1174, %v1176
        %v1178 = vsel %vm1166, %v1156, %v1159
        %v1179 = vsel %vm1169, %v1165, 1326507024
        %v1180 = vsel %vm1168, %v1162, %v1179
        %v1181 = vsel %vm1167, %v1178, %v1180
        %v1182 = vshll.u32 %v1142, 8
        %v1183 = vmul.u32.u64.compose %v1182, %v1181
        %v1184 = vextract.low.u32 %v1183
        %v1185 = vextract.high.u32 %v1183
        %v1186 = vmul.u32.u64.compose %v1182, %v1177
        %v1187 = vextract.low.u32 %v1186
        %v1188 = vextract.high.u32 %v1186
        %v1189 = vmul.u32 %v1182, %v1173
        %v1190 = vadd.s32 %v1185, %v1187
        %vm1191 = vc.u32 %v1185, %v1187
        %v1192 = vadd.s32 %v1188, 1
        %v1193 = vsel %vm1191, %v1192, %v1188
        %v1194 = vadd.s32 %v1189, %v1193
        %v1195 = vadd.s32 %v1194, 536870912
        %v1196 = vshrl.u32 %v1195, 30
        %v1197 = vshll.u32 %v1196, 30
        %v1198 = vsub.s32 %v1194, %v1197
        %vm1199 = vcmp.lt.s32.totalorder %v1198, 0
        %v1200 = vsub.s32 0, %v1198
        %v1201 = vsel %vm1199, %v1200, %v1198
        %v1202 = vclz %v1201
        %v1203 = vsub.s32 %v1202, 2
        %vm1204 = vcmp.gt.s32.totalorder 0, %v1203
        %v1205 = vsel %vm1204, 0, %v1203
        %v1206 = vsub.s32 32, %v1205
        %v1207 = vshll.u32 %v1198, %v1205
        %v1208 = vshrl.u32 %v1190, %v1206
        %v1209 = vor.u32 %v1207, %v1208
        %v1210 = vsub.s32 4294967266, %v1205
        %v1211 = vadd.s32 %v1210, 127
        %v1212 = vshll.u32 %v1211, 23
        %v1213 = vor.u32 4788187, %v1212
        %v1214 = vand.u32 2147483647, %v1213
        %v1216 = vcvt.s32.f32 %v1209
        %v1217 = vmul.f32 %v1216, %v1214
        %v1218 = vxor.u32 %v1217, 2147483648
        %v1219 = vsel %vm1136, %v1218, %v1217
        %v1220 = vsub.s32 4, %v1196
        %v1221 = vsel %vm1136, %v1220, %v1196
        %v1222 = vsel %vm1135, %v397, %v1219
        %v1223 = vsel %vm1135, 0, %v1221
        %v1224 = vcosq.f32.pop %v1222
        %v1225 = vsinq.f32.pop %v1222
        %vm1226 = vweird.f32 %v397
        %v1227 = vadd.s32 %v1223, 3
        %v1228 = vand.u32 %v1227, 3
        %vm1229 = vcmp.lt.s32.totalorder %v1228, 2
        %vm1230 = vcmp.eq.s32.totalorder %v1228, 0
        %v1231 = vxor.u32 %v1225, 2147483648
        %v1232 = vsel %vm1230, %v1224, %v1231
        %vm1233 = vcmp.eq.s32.totalorder %v1228, 2
        %v1234 = vxor.u32 %v1224, 2147483648
        %v1235 = vsel %vm1233, %v1234, %v1225
        %v1236 = vsel %vm1229, %v1232, %v1235
        %v1237 = vsel %vm1226, nan, %v1236
        %v1238 = vand.u32 2147483647, %v398
        %vm1239 = vcmp.le.f32.partialorder %v1238, 0.7853982
        %vm1240 = vcmp.lt.s32.totalorder %v398, 0
        %v1241 = vand.u32 %v398, 2139095040
        %v1242 = vshrl.u32 %v1241, 23
        %v1243 = vsub.s32 %v1242, 127
        %v1244 = vand.u32 2147483647, %v398
        %v1245 = vand.u32 %v1244, 8388607
        %v1246 = vor.u32 %v1245, 8388608
        %v1247 = vsub.s32 0, %v1246
        %v1248 = vadd.s32 %v1243, 1
        %vm1249 = vcmp.gt.s32.totalorder %v1248, 0
        %v1250 = vsel %vm1249, %v1248, 0
        %v1251 = vshrl.u32 %v1250, 5
        %v1252 = vand.u32 %v1250, 31
        %v1253 = vsub.s32 32, %v1252
        %v1254 = vshrl.u32 683565275, %v1253
        %v1255 = vshll.u32 683565275, %v1252
        %v1256 = vshrl.u32 2475754826, %v1253
        %v1257 = vor.u32 %v1255, %v1256
        %v1258 = vshll.u32 2475754826, %v1252
        %v1259 = vshrl.u32 2131351028, %v1253
        %v1260 = vor.u32 %v1258, %v1259
        %v1261 = vshll.u32 2131351028, %v1252
        %v1262 = vshrl.u32 2102212464, %v1253
        %v1263 = vor.u32 %v1261, %v1262
        %v1264 = vshll.u32 2102212464, %v1252
        %v1265 = vshrl.u32 920167782, %v1253
        %v1266 = vor.u32 %v1264, %v1265
        %v1267 = vshll.u32 920167782, %v1252
        %v1268 = vshrl.u32 1326507024, %v1253
        %v1269 = vor.u32 %v1267, %v1268
        %vm1270 = vcmp.lt.s32.totalorder %v1251, 1
        %vm1271 = vcmp.lt.s32.totalorder %v1251, 2
        %vm1272 = vcmp.lt.s32.totalorder %v1251, 3
        %vm1273 = vcmp.lt.s32.totalorder %v1251, 4
        %v1274 = vsel %vm1270, %v1254, %v1257
        %v1275 = vsel %vm1273, %v1263, 2102212464
        %v1276 = vsel %vm1272, %v1260, %v1275
        %v1277 = vsel %vm1271, %v1274, %v1276
        %v1278 = vsel %vm1270, %v1257, %v1260
        %v1279 = vsel %vm1273, %v1266, 920167782
        %v1280 = vsel %vm1272, %v1263, %v1279
        %v1281 = vsel %vm1271, %v1278, %v1280
        %v1282 = vsel %vm1270, %v1260, %v1263
        %v1283 = vsel %vm1273, %v1269, 1326507024
        %v1284 = vsel %vm1272, %v1266, %v1283
        %v1285 = vsel %vm1271, %v1282, %v1284
        %v1286 = vshll.u32 %v1246, 8
        %v1287 = vmul.u32.u64.compose %v1286, %v1285
        %v1288 = vextract.low.u32 %v1287
        %v1289 = vextract.high.u32 %v1287
        %v1290 = vmul.u32.u64.compose %v1286, %v1281
        %v1291 = vextract.low.u32 %v1290
        %v1292 = vextract.high.u32 %v1290
        %v1293 = vmul.u32 %v1286, %v1277
        %v1294 = vadd.s32 %v1289, %v1291
        %vm1295 = vc.u32 %v1289, %v1291
        %v1296 = vadd.s32 %v1292, 1
        %v1297 = vsel %vm1295, %v1296, %v1292
        %v1298 = vadd.s32 %v1293, %v1297
        %v1299 = vadd.s32 %v1298, 536870912
        %v1300 = vshrl.u32 %v1299, 30
        %v1301 = vshll.u32 %v1300, 30
        %v1302 = vsub.s32 %v1298, %v1301
        %vm1303 = vcmp.lt.s32.totalorder %v1302, 0
        %v1304 = vsub.s32 0, %v1302
        %v1305 = vsel %vm1303, %v1304, %v1302
        %v1306 = vclz %v1305
        %v1307 = vsub.s32 %v1306, 2
        %vm1308 = vcmp.gt.s32.totalorder 0, %v1307
        %v1309 = vsel %vm1308, 0, %v1307
        %v1310 = vsub.s32 32, %v1309
        %v1311 = vshll.u32 %v1302, %v1309
        %v1312 = vshrl.u32 %v1294, %v1310
        %v1313 = vor.u32 %v1311, %v1312
        %v1314 = vsub.s32 4294967266, %v1309
        %v1315 = vadd.s32 %v1314, 127
        %v1316 = vshll.u32 %v1315, 23
        %v1317 = vor.u32 4788187, %v1316
        %v1318 = vand.u32 2147483647, %v1317
        %v1320 = vcvt.s32.f32 %v1313
        %v1321 = vmul.f32 %v1320, %v1318
        %v1322 = vxor.u32 %v1321, 2147483648
        %v1323 = vsel %vm1240, %v1322, %v1321
        %v1324 = vsub.s32 4, %v1300
        %v1325 = vsel %vm1240, %v1324, %v1300
        %v1326 = vsel %vm1239, %v398, %v1323
        %v1327 = vsel %vm1239, 0, %v1325
        %v1328 = vcosq.f32.pop %v1326
        %v1329 = vsinq.f32.pop %v1326
        %vm1330 = vweird.f32 %v398
        %v1331 = vadd.s32 %v1327, 3
        %v1332 = vand.u32 %v1331, 3
        %vm1333 = vcmp.lt.s32.totalorder %v1332, 2
        %vm1334 = vcmp.eq.s32.totalorder %v1332, 0
        %v1335 = vxor.u32 %v1329, 2147483648
        %v1336 = vsel %vm1334, %v1328, %v1335
        %vm1337 = vcmp.eq.s32.totalorder %v1332, 2
        %v1338 = vxor.u32 %v1328, 2147483648
        %v1339 = vsel %vm1337, %v1338, %v1329
        %v1340 = vsel %vm1333, %v1336, %v1339
        %v1341 = vsel %vm1330, nan, %v1340
        %v1342 = vand.u32 2147483647, %v399
        %vm1343 = vcmp.le.f32.partialorder %v1342, 0.7853982
        %vm1344 = vcmp.lt.s32.totalorder %v399, 0
        %v1345 = vand.u32 %v399, 2139095040
        %v1346 = vshrl.u32 %v1345, 23
        %v1347 = vsub.s32 %v1346, 127
        %v1348 = vand.u32 2147483647, %v399
        %v1349 = vand.u32 %v1348, 8388607
        %v1350 = vor.u32 %v1349, 8388608
        %v1351 = vsub.s32 0, %v1350
        %v1352 = vadd.s32 %v1347, 1
        %vm1353 = vcmp.gt.s32.totalorder %v1352, 0
        %v1354 = vsel %vm1353, %v1352, 0
        %v1355 = vshrl.u32 %v1354, 5
        %v1356 = vand.u32 %v1354, 31
        %v1357 = vsub.s32 32, %v1356
        %v1358 = vshrl.u32 683565275, %v1357
        %v1359 = vshll.u32 683565275, %v1356
        %v1360 = vshrl.u32 2475754826, %v1357
        %v1361 = vor.u32 %v1359, %v1360
        %v1362 = vshll.u32 2475754826, %v1356
        %v1363 = vshrl.u32 2131351028, %v1357
        %v1364 = vor.u32 %v1362, %v1363
        %v1365 = vshll.u32 2131351028, %v1356
        %v1366 = vshrl.u32 2102212464, %v1357
        %v1367 = vor.u32 %v1365, %v1366
        %v1368 = vshll.u32 2102212464, %v1356
        %v1369 = vshrl.u32 920167782, %v1357
        %v1370 = vor.u32 %v1368, %v1369
        %v1371 = vshll.u32 920167782, %v1356
        %v1372 = vshrl.u32 1326507024, %v1357
        %v1373 = vor.u32 %v1371, %v1372
        %vm1374 = vcmp.lt.s32.totalorder %v1355, 1
        %vm1375 = vcmp.lt.s32.totalorder %v1355, 2
        %vm1376 = vcmp.lt.s32.totalorder %v1355, 3
        %vm1377 = vcmp.lt.s32.totalorder %v1355, 4
        %v1378 = vsel %vm1374, %v1358, %v1361
        %v1379 = vsel %vm1377, %v1367, 2102212464
        %v1380 = vsel %vm1376, %v1364, %v1379
        %v1381 = vsel %vm1375, %v1378, %v1380
        %v1382 = vsel %vm1374, %v1361, %v1364
        %v1383 = vsel %vm1377, %v1370, 920167782
        %v1384 = vsel %vm1376, %v1367, %v1383
        %v1385 = vsel %vm1375, %v1382, %v1384
        %v1386 = vsel %vm1374, %v1364, %v1367
        %v1387 = vsel %vm1377, %v1373, 1326507024
        %v1388 = vsel %vm1376, %v1370, %v1387
        %v1389 = vsel %vm1375, %v1386, %v1388
        %v1390 = vshll.u32 %v1350, 8
        %v1391 = vmul.u32.u64.compose %v1390, %v1389
        %v1392 = vextract.low.u32 %v1391
        %v1393 = vextract.high.u32 %v1391
        %v1394 = vmul.u32.u64.compose %v1390, %v1385
        %v1395 = vextract.low.u32 %v1394
        %v1396 = vextract.high.u32 %v1394
        %v1397 = vmul.u32 %v1390, %v1381
        %v1398 = vadd.s32 %v1393, %v1395
        %vm1399 = vc.u32 %v1393, %v1395
        %v1400 = vadd.s32 %v1396, 1
        %v1401 = vsel %vm1399, %v1400, %v1396
        %v1402 = vadd.s32 %v1397, %v1401
        %v1403 = vadd.s32 %v1402, 536870912
        %v1404 = vshrl.u32 %v1403, 30
        %v1405 = vshll.u32 %v1404, 30
        %v1406 = vsub.s32 %v1402, %v1405
        %vm1407 = vcmp.lt.s32.totalorder %v1406, 0
        %v1408 = vsub.s32 0, %v1406
        %v1409 = vsel %vm1407, %v1408, %v1406
        %v1410 = vclz %v1409
        %v1411 = vsub.s32 %v1410, 2
        %vm1412 = vcmp.gt.s32.totalorder 0, %v1411
        %v1413 = vsel %vm1412, 0, %v1411
        %v1414 = vsub.s32 32, %v1413
        %v1415 = vshll.u32 %v1406, %v1413
        %v1416 = vshrl.u32 %v1398, %v1414
        %v1417 = vor.u32 %v1415, %v1416
        %v1418 = vsub.s32 4294967266, %v1413
        %v1419 = vadd.s32 %v1418, 127
        %v1420 = vshll.u32 %v1419, 23
        %v1421 = vor.u32 4788187, %v1420
        %v1422 = vand.u32 2147483647, %v1421
        %v1424 = vcvt.s32.f32 %v1417
        %v1425 = vmul.f32 %v1424, %v1422
        %v1426 = vxor.u32 %v1425, 2147483648
        %v1427 = vsel %vm1344, %v1426, %v1425
        %v1428 = vsub.s32 4, %v1404
        %v1429 = vsel %vm1344, %v1428, %v1404
        %v1430 = vsel %vm1343, %v399, %v1427
        %v1431 = vsel %vm1343, 0, %v1429
        %v1432 = vcosq.f32.pop %v1430
        %v1433 = vsinq.f32.pop %v1430
        %vm1434 = vweird.f32 %v399
        %v1435 = vadd.s32 %v1431, 3
        %v1436 = vand.u32 %v1435, 3
        %vm1437 = vcmp.lt.s32.totalorder %v1436, 2
        %vm1438 = vcmp.eq.s32.totalorder %v1436, 0
        %v1439 = vxor.u32 %v1433, 2147483648
        %v1440 = vsel %vm1438, %v1432, %v1439
        %vm1441 = vcmp.eq.s32.totalorder %v1436, 2
        %v1442 = vxor.u32 %v1432, 2147483648
        %v1443 = vsel %vm1441, %v1442, %v1433
        %v1444 = vsel %vm1437, %v1440, %v1443
        %v1445 = vsel %vm1434, nan, %v1444
        %v1446 = vand.u32 2147483647, %v400
        %vm1447 = vcmp.le.f32.partialorder %v1446, 0.7853982
        %vm1448 = vcmp.lt.s32.totalorder %v400, 0
        %v1449 = vand.u32 %v400, 2139095040
        %v1450 = vshrl.u32 %v1449, 23
        %v1451 = vsub.s32 %v1450, 127
        %v1452 = vand.u32 2147483647, %v400
        %v1453 = vand.u32 %v1452, 8388607
        %v1454 = vor.u32 %v1453, 8388608
        %v1455 = vsub.s32 0, %v1454
        %v1456 = vadd.s32 %v1451, 1
        %vm1457 = vcmp.gt.s32.totalorder %v1456, 0
        %v1458 = vsel %vm1457, %v1456, 0
        %v1459 = vshrl.u32 %v1458, 5
        %v1460 = vand.u32 %v1458, 31
        %v1461 = vsub.s32 32, %v1460
        %v1462 = vshrl.u32 683565275, %v1461
        %v1463 = vshll.u32 683565275, %v1460
        %v1464 = vshrl.u32 2475754826, %v1461
        %v1465 = vor.u32 %v1463, %v1464
        %v1466 = vshll.u32 2475754826, %v1460
        %v1467 = vshrl.u32 2131351028, %v1461
        %v1468 = vor.u32 %v1466, %v1467
        %v1469 = vshll.u32 2131351028, %v1460
        %v1470 = vshrl.u32 2102212464, %v1461
        %v1471 = vor.u32 %v1469, %v1470
        %v1472 = vshll.u32 2102212464, %v1460
        %v1473 = vshrl.u32 920167782, %v1461
        %v1474 = vor.u32 %v1472, %v1473
        %v1475 = vshll.u32 920167782, %v1460
        %v1476 = vshrl.u32 1326507024, %v1461
        %v1477 = vor.u32 %v1475, %v1476
        %vm1478 = vcmp.lt.s32.totalorder %v1459, 1
        %vm1479 = vcmp.lt.s32.totalorder %v1459, 2
        %vm1480 = vcmp.lt.s32.totalorder %v1459, 3
        %vm1481 = vcmp.lt.s32.totalorder %v1459, 4
        %v1482 = vsel %vm1478, %v1462, %v1465
        %v1483 = vsel %vm1481, %v1471, 2102212464
        %v1484 = vsel %vm1480, %v1468, %v1483
        %v1485 = vsel %vm1479, %v1482, %v1484
        %v1486 = vsel %vm1478, %v1465, %v1468
        %v1487 = vsel %vm1481, %v1474, 920167782
        %v1488 = vsel %vm1480, %v1471, %v1487
        %v1489 = vsel %vm1479, %v1486, %v1488
        %v1490 = vsel %vm1478, %v1468, %v1471
        %v1491 = vsel %vm1481, %v1477, 1326507024
        %v1492 = vsel %vm1480, %v1474, %v1491
        %v1493 = vsel %vm1479, %v1490, %v1492
        %v1494 = vshll.u32 %v1454, 8
        %v1495 = vmul.u32.u64.compose %v1494, %v1493
        %v1496 = vextract.low.u32 %v1495
        %v1497 = vextract.high.u32 %v1495
        %v1498 = vmul.u32.u64.compose %v1494, %v1489
        %v1499 = vextract.low.u32 %v1498
        %v1500 = vextract.high.u32 %v1498
        %v1501 = vmul.u32 %v1494, %v1485
        %v1502 = vadd.s32 %v1497, %v1499
        %vm1503 = vc.u32 %v1497, %v1499
        %v1504 = vadd.s32 %v1500, 1
        %v1505 = vsel %vm1503, %v1504, %v1500
        %v1506 = vadd.s32 %v1501, %v1505
        %v1507 = vadd.s32 %v1506, 536870912
        %v1508 = vshrl.u32 %v1507, 30
        %v1509 = vshll.u32 %v1508, 30
        %v1510 = vsub.s32 %v1506, %v1509
        %vm1511 = vcmp.lt.s32.totalorder %v1510, 0
        %v1512 = vsub.s32 0, %v1510
        %v1513 = vsel %vm1511, %v1512, %v1510
        %v1514 = vclz %v1513
        %v1515 = vsub.s32 %v1514, 2
        %vm1516 = vcmp.gt.s32.totalorder 0, %v1515
        %v1517 = vsel %vm1516, 0, %v1515
        %v1518 = vsub.s32 32, %v1517
        %v1519 = vshll.u32 %v1510, %v1517
        %v1520 = vshrl.u32 %v1502, %v1518
        %v1521 = vor.u32 %v1519, %v1520
        %v1522 = vsub.s32 4294967266, %v1517
        %v1523 = vadd.s32 %v1522, 127
        %v1524 = vshll.u32 %v1523, 23
        %v1525 = vor.u32 4788187, %v1524
        %v1526 = vand.u32 2147483647, %v1525
        %v1528 = vcvt.s32.f32 %v1521
        %v1529 = vmul.f32 %v1528, %v1526
        %v1530 = vxor.u32 %v1529, 2147483648
        %v1531 = vsel %vm1448, %v1530, %v1529
        %v1532 = vsub.s32 4, %v1508
        %v1533 = vsel %vm1448, %v1532, %v1508
        %v1534 = vsel %vm1447, %v400, %v1531
        %v1535 = vsel %vm1447, 0, %v1533
        %v1536 = vcosq.f32.pop %v1534
        %v1537 = vsinq.f32.pop %v1534
        %vm1538 = vweird.f32 %v400
        %v1539 = vadd.s32 %v1535, 3
        %v1540 = vand.u32 %v1539, 3
        %vm1541 = vcmp.lt.s32.totalorder %v1540, 2
        %vm1542 = vcmp.eq.s32.totalorder %v1540, 0
        %v1543 = vxor.u32 %v1537, 2147483648
        %v1544 = vsel %vm1542, %v1536, %v1543
        %vm1545 = vcmp.eq.s32.totalorder %v1540, 2
        %v1546 = vxor.u32 %v1536, 2147483648
        %v1547 = vsel %vm1545, %v1546, %v1537
        %v1548 = vsel %vm1541, %v1544, %v1547
        %v1549 = vsel %vm1538, nan, %v1548
        %v1550 = vand.u32 2147483647, %v401
        %vm1551 = vcmp.le.f32.partialorder %v1550, 0.7853982
        %vm1552 = vcmp.lt.s32.totalorder %v401, 0
        %v1553 = vand.u32 %v401, 2139095040
        %v1554 = vshrl.u32 %v1553, 23
        %v1555 = vsub.s32 %v1554, 127
        %v1556 = vand.u32 2147483647, %v401
        %v1557 = vand.u32 %v1556, 8388607
        %v1558 = vor.u32 %v1557, 8388608
        %v1559 = vsub.s32 0, %v1558
        %v1560 = vadd.s32 %v1555, 1
        %vm1561 = vcmp.gt.s32.totalorder %v1560, 0
        %v1562 = vsel %vm1561, %v1560, 0
        %v1563 = vshrl.u32 %v1562, 5
        %v1564 = vand.u32 %v1562, 31
        %v1565 = vsub.s32 32, %v1564
        %v1566 = vshrl.u32 683565275, %v1565
        %v1567 = vshll.u32 683565275, %v1564
        %v1568 = vshrl.u32 2475754826, %v1565
        %v1569 = vor.u32 %v1567, %v1568
        %v1570 = vshll.u32 2475754826, %v1564
        %v1571 = vshrl.u32 2131351028, %v1565
        %v1572 = vor.u32 %v1570, %v1571
        %v1573 = vshll.u32 2131351028, %v1564
        %v1574 = vshrl.u32 2102212464, %v1565
        %v1575 = vor.u32 %v1573, %v1574
        %v1576 = vshll.u32 2102212464, %v1564
        %v1577 = vshrl.u32 920167782, %v1565
        %v1578 = vor.u32 %v1576, %v1577
        %v1579 = vshll.u32 920167782, %v1564
        %v1580 = vshrl.u32 1326507024, %v1565
        %v1581 = vor.u32 %v1579, %v1580
        %vm1582 = vcmp.lt.s32.totalorder %v1563, 1
        %vm1583 = vcmp.lt.s32.totalorder %v1563, 2
        %vm1584 = vcmp.lt.s32.totalorder %v1563, 3
        %vm1585 = vcmp.lt.s32.totalorder %v1563, 4
        %v1586 = vsel %vm1582, %v1566, %v1569
        %v1587 = vsel %vm1585, %v1575, 2102212464
        %v1588 = vsel %vm1584, %v1572, %v1587
        %v1589 = vsel %vm1583, %v1586, %v1588
        %v1590 = vsel %vm1582, %v1569, %v1572
        %v1591 = vsel %vm1585, %v1578, 920167782
        %v1592 = vsel %vm1584, %v1575, %v1591
        %v1593 = vsel %vm1583, %v1590, %v1592
        %v1594 = vsel %vm1582, %v1572, %v1575
        %v1595 = vsel %vm1585, %v1581, 1326507024
        %v1596 = vsel %vm1584, %v1578, %v1595
        %v1597 = vsel %vm1583, %v1594, %v1596
        %v1598 = vshll.u32 %v1558, 8
        %v1599 = vmul.u32.u64.compose %v1598, %v1597
        %v1600 = vextract.low.u32 %v1599
        %v1601 = vextract.high.u32 %v1599
        %v1602 = vmul.u32.u64.compose %v1598, %v1593
        %v1603 = vextract.low.u32 %v1602
        %v1604 = vextract.high.u32 %v1602
        %v1605 = vmul.u32 %v1598, %v1589
        %v1606 = vadd.s32 %v1601, %v1603
        %vm1607 = vc.u32 %v1601, %v1603
        %v1608 = vadd.s32 %v1604, 1
        %v1609 = vsel %vm1607, %v1608, %v1604
        %v1610 = vadd.s32 %v1605, %v1609
        %v1611 = vadd.s32 %v1610, 536870912
        %v1612 = vshrl.u32 %v1611, 30
        %v1613 = vshll.u32 %v1612, 30
        %v1614 = vsub.s32 %v1610, %v1613
        %vm1615 = vcmp.lt.s32.totalorder %v1614, 0
        %v1616 = vsub.s32 0, %v1614
        %v1617 = vsel %vm1615, %v1616, %v1614
        %v1618 = vclz %v1617
        %v1619 = vsub.s32 %v1618, 2
        %vm1620 = vcmp.gt.s32.totalorder 0, %v1619
        %v1621 = vsel %vm1620, 0, %v1619
        %v1622 = vsub.s32 32, %v1621
        %v1623 = vshll.u32 %v1614, %v1621
        %v1624 = vshrl.u32 %v1606, %v1622
        %v1625 = vor.u32 %v1623, %v1624
        %v1626 = vsub.s32 4294967266, %v1621
        %v1627 = vadd.s32 %v1626, 127
        %v1628 = vshll.u32 %v1627, 23
        %v1629 = vor.u32 4788187, %v1628
        %v1630 = vand.u32 2147483647, %v1629
        %v1632 = vcvt.s32.f32 %v1625
        %v1633 = vmul.f32 %v1632, %v1630
        %v1634 = vxor.u32 %v1633, 2147483648
        %v1635 = vsel %vm1552, %v1634, %v1633
        %v1636 = vsub.s32 4, %v1612
        %v1637 = vsel %vm1552, %v1636, %v1612
        %v1638 = vsel %vm1551, %v401, %v1635
        %v1639 = vsel %vm1551, 0, %v1637
        %v1640 = vcosq.f32.pop %v1638
        %v1641 = vsinq.f32.pop %v1638
        %vm1642 = vweird.f32 %v401
        %v1643 = vadd.s32 %v1639, 3
        %v1644 = vand.u32 %v1643, 3
        %vm1645 = vcmp.lt.s32.totalorder %v1644, 2
        %vm1646 = vcmp.eq.s32.totalorder %v1644, 0
        %v1647 = vxor.u32 %v1641, 2147483648
        %v1648 = vsel %vm1646, %v1640, %v1647
        %vm1649 = vcmp.eq.s32.totalorder %v1644, 2
        %v1650 = vxor.u32 %v1640, 2147483648
        %v1651 = vsel %vm1649, %v1650, %v1641
        %v1652 = vsel %vm1645, %v1648, %v1651
        %v1653 = vsel %vm1642, nan, %v1652
        %v1654 = vand.u32 2147483647, %v402
        %vm1655 = vcmp.le.f32.partialorder %v1654, 0.7853982
        %vm1656 = vcmp.lt.s32.totalorder %v402, 0
        %v1657 = vand.u32 %v402, 2139095040
        %v1658 = vshrl.u32 %v1657, 23
        %v1659 = vsub.s32 %v1658, 127
        %v1660 = vand.u32 2147483647, %v402
        %v1661 = vand.u32 %v1660, 8388607
        %v1662 = vor.u32 %v1661, 8388608
        %v1663 = vsub.s32 0, %v1662
        %v1664 = vadd.s32 %v1659, 1
        %vm1665 = vcmp.gt.s32.totalorder %v1664, 0
        %v1666 = vsel %vm1665, %v1664, 0
        %v1667 = vshrl.u32 %v1666, 5
        %v1668 = vand.u32 %v1666, 31
        %v1669 = vsub.s32 32, %v1668
        %v1670 = vshrl.u32 683565275, %v1669
        %v1671 = vshll.u32 683565275, %v1668
        %v1672 = vshrl.u32 2475754826, %v1669
        %v1673 = vor.u32 %v1671, %v1672
        %v1674 = vshll.u32 2475754826, %v1668
        %v1675 = vshrl.u32 2131351028, %v1669
        %v1676 = vor.u32 %v1674, %v1675
        %v1677 = vshll.u32 2131351028, %v1668
        %v1678 = vshrl.u32 2102212464, %v1669
        %v1679 = vor.u32 %v1677, %v1678
        %v1680 = vshll.u32 2102212464, %v1668
        %v1681 = vshrl.u32 920167782, %v1669
        %v1682 = vor.u32 %v1680, %v1681
        %v1683 = vshll.u32 920167782, %v1668
        %v1684 = vshrl.u32 1326507024, %v1669
        %v1685 = vor.u32 %v1683, %v1684
        %vm1686 = vcmp.lt.s32.totalorder %v1667, 1
        %vm1687 = vcmp.lt.s32.totalorder %v1667, 2
        %vm1688 = vcmp.lt.s32.totalorder %v1667, 3
        %vm1689 = vcmp.lt.s32.totalorder %v1667, 4
        %v1690 = vsel %vm1686, %v1670, %v1673
        %v1691 = vsel %vm1689, %v1679, 2102212464
        %v1692 = vsel %vm1688, %v1676, %v1691
        %v1693 = vsel %vm1687, %v1690, %v1692
        %v1694 = vsel %vm1686, %v1673, %v1676
        %v1695 = vsel %vm1689, %v1682, 920167782
        %v1696 = vsel %vm1688, %v1679, %v1695
        %v1697 = vsel %vm1687, %v1694, %v1696
        %v1698 = vsel %vm1686, %v1676, %v1679
        %v1699 = vsel %vm1689, %v1685, 1326507024
        %v1700 = vsel %vm1688, %v1682, %v1699
        %v1701 = vsel %vm1687, %v1698, %v1700
        %v1702 = vshll.u32 %v1662, 8
        %v1703 = vmul.u32.u64.compose %v1702, %v1701
        %v1704 = vextract.low.u32 %v1703
        %v1705 = vextract.high.u32 %v1703
        %v1706 = vmul.u32.u64.compose %v1702, %v1697
        %v1707 = vextract.low.u32 %v1706
        %v1708 = vextract.high.u32 %v1706
        %v1709 = vmul.u32 %v1702, %v1693
        %v1710 = vadd.s32 %v1705, %v1707
        %vm1711 = vc.u32 %v1705, %v1707
        %v1712 = vadd.s32 %v1708, 1
        %v1713 = vsel %vm1711, %v1712, %v1708
        %v1714 = vadd.s32 %v1709, %v1713
        %v1715 = vadd.s32 %v1714, 536870912
        %v1716 = vshrl.u32 %v1715, 30
        %v1717 = vshll.u32 %v1716, 30
        %v1718 = vsub.s32 %v1714, %v1717
        %vm1719 = vcmp.lt.s32.totalorder %v1718, 0
        %v1720 = vsub.s32 0, %v1718
        %v1721 = vsel %vm1719, %v1720, %v1718
        %v1722 = vclz %v1721
        %v1723 = vsub.s32 %v1722, 2
        %vm1724 = vcmp.gt.s32.totalorder 0, %v1723
        %v1725 = vsel %vm1724, 0, %v1723
        %v1726 = vsub.s32 32, %v1725
        %v1727 = vshll.u32 %v1718, %v1725
        %v1728 = vshrl.u32 %v1710, %v1726
        %v1729 = vor.u32 %v1727, %v1728
        %v1730 = vsub.s32 4294967266, %v1725
        %v1731 = vadd.s32 %v1730, 127
        %v1732 = vshll.u32 %v1731, 23
        %v1733 = vor.u32 4788187, %v1732
        %v1734 = vand.u32 2147483647, %v1733
        %v1736 = vcvt.s32.f32 %v1729
        %v1737 = vmul.f32 %v1736, %v1734
        %v1738 = vxor.u32 %v1737, 2147483648
        %v1739 = vsel %vm1656, %v1738, %v1737
        %v1740 = vsub.s32 4, %v1716
        %v1741 = vsel %vm1656, %v1740, %v1716
        %v1742 = vsel %vm1655, %v402, %v1739
        %v1743 = vsel %vm1655, 0, %v1741
        %v1744 = vcosq.f32.pop %v1742
        %v1745 = vsinq.f32.pop %v1742
        %vm1746 = vweird.f32 %v402
        %v1747 = vadd.s32 %v1743, 3
        %v1748 = vand.u32 %v1747, 3
        %vm1749 = vcmp.lt.s32.totalorder %v1748, 2
        %vm1750 = vcmp.eq.s32.totalorder %v1748, 0
        %v1751 = vxor.u32 %v1745, 2147483648
        %v1752 = vsel %vm1750, %v1744, %v1751
        %vm1753 = vcmp.eq.s32.totalorder %v1748, 2
        %v1754 = vxor.u32 %v1744, 2147483648
        %v1755 = vsel %vm1753, %v1754, %v1745
        %v1756 = vsel %vm1749, %v1752, %v1755
        %v1757 = vsel %vm1746, nan, %v1756
        %v1758 = vand.u32 2147483647, %v403
        %vm1759 = vcmp.le.f32.partialorder %v1758, 0.7853982
        %vm1760 = vcmp.lt.s32.totalorder %v403, 0
        %v1761 = vand.u32 %v403, 2139095040
        %v1762 = vshrl.u32 %v1761, 23
        %v1763 = vsub.s32 %v1762, 127
        %v1764 = vand.u32 2147483647, %v403
        %v1765 = vand.u32 %v1764, 8388607
        %v1766 = vor.u32 %v1765, 8388608
        %v1767 = vsub.s32 0, %v1766
        %v1768 = vadd.s32 %v1763, 1
        %vm1769 = vcmp.gt.s32.totalorder %v1768, 0
        %v1770 = vsel %vm1769, %v1768, 0
        %v1771 = vshrl.u32 %v1770, 5
        %v1772 = vand.u32 %v1770, 31
        %v1773 = vsub.s32 32, %v1772
        %v1774 = vshrl.u32 683565275, %v1773
        %v1775 = vshll.u32 683565275, %v1772
        %v1776 = vshrl.u32 2475754826, %v1773
        %v1777 = vor.u32 %v1775, %v1776
        %v1778 = vshll.u32 2475754826, %v1772
        %v1779 = vshrl.u32 2131351028, %v1773
        %v1780 = vor.u32 %v1778, %v1779
        %v1781 = vshll.u32 2131351028, %v1772
        %v1782 = vshrl.u32 2102212464, %v1773
        %v1783 = vor.u32 %v1781, %v1782
        %v1784 = vshll.u32 2102212464, %v1772
        %v1785 = vshrl.u32 920167782, %v1773
        %v1786 = vor.u32 %v1784, %v1785
        %v1787 = vshll.u32 920167782, %v1772
        %v1788 = vshrl.u32 1326507024, %v1773
        %v1789 = vor.u32 %v1787, %v1788
        %vm1790 = vcmp.lt.s32.totalorder %v1771, 1
        %vm1791 = vcmp.lt.s32.totalorder %v1771, 2
        %vm1792 = vcmp.lt.s32.totalorder %v1771, 3
        %vm1793 = vcmp.lt.s32.totalorder %v1771, 4
        %v1794 = vsel %vm1790, %v1774, %v1777
        %v1795 = vsel %vm1793, %v1783, 2102212464
        %v1796 = vsel %vm1792, %v1780, %v1795
        %v1797 = vsel %vm1791, %v1794, %v1796
        %v1798 = vsel %vm1790, %v1777, %v1780
        %v1799 = vsel %vm1793, %v1786, 920167782
        %v1800 = vsel %vm1792, %v1783, %v1799
        %v1801 = vsel %vm1791, %v1798, %v1800
        %v1802 = vsel %vm1790, %v1780, %v1783
        %v1803 = vsel %vm1793, %v1789, 1326507024
        %v1804 = vsel %vm1792, %v1786, %v1803
        %v1805 = vsel %vm1791, %v1802, %v1804
        %v1806 = vshll.u32 %v1766, 8
        %v1807 = vmul.u32.u64.compose %v1806, %v1805
        %v1808 = vextract.low.u32 %v1807
        %v1809 = vextract.high.u32 %v1807
        %v1810 = vmul.u32.u64.compose %v1806, %v1801
        %v1811 = vextract.low.u32 %v1810
        %v1812 = vextract.high.u32 %v1810
        %v1813 = vmul.u32 %v1806, %v1797
        %v1814 = vadd.s32 %v1809, %v1811
        %vm1815 = vc.u32 %v1809, %v1811
        %v1816 = vadd.s32 %v1812, 1
        %v1817 = vsel %vm1815, %v1816, %v1812
        %v1818 = vadd.s32 %v1813, %v1817
        %v1819 = vadd.s32 %v1818, 536870912
        %v1820 = vshrl.u32 %v1819, 30
        %v1821 = vshll.u32 %v1820, 30
        %v1822 = vsub.s32 %v1818, %v1821
        %vm1823 = vcmp.lt.s32.totalorder %v1822, 0
        %v1824 = vsub.s32 0, %v1822
        %v1825 = vsel %vm1823, %v1824, %v1822
        %v1826 = vclz %v1825
        %v1827 = vsub.s32 %v1826, 2
        %vm1828 = vcmp.gt.s32.totalorder 0, %v1827
        %v1829 = vsel %vm1828, 0, %v1827
        %v1830 = vsub.s32 32, %v1829
        %v1831 = vshll.u32 %v1822, %v1829
        %v1832 = vshrl.u32 %v1814, %v1830
        %v1833 = vor.u32 %v1831, %v1832
        %v1834 = vsub.s32 4294967266, %v1829
        %v1835 = vadd.s32 %v1834, 127
        %v1836 = vshll.u32 %v1835, 23
        %v1837 = vor.u32 4788187, %v1836
        %v1838 = vand.u32 2147483647, %v1837
        %v1840 = vcvt.s32.f32 %v1833
        %v1841 = vmul.f32 %v1840, %v1838
        %v1842 = vxor.u32 %v1841, 2147483648
        %v1843 = vsel %vm1760, %v1842, %v1841
        %v1844 = vsub.s32 4, %v1820
        %v1845 = vsel %vm1760, %v1844, %v1820
        %v1846 = vsel %vm1759, %v403, %v1843
        %v1847 = vsel %vm1759, 0, %v1845
        %v1848 = vcosq.f32.pop %v1846
        %v1849 = vsinq.f32.pop %v1846
        %vm1850 = vweird.f32 %v403
        %v1851 = vadd.s32 %v1847, 3
        %v1852 = vand.u32 %v1851, 3
        %vm1853 = vcmp.lt.s32.totalorder %v1852, 2
        %vm1854 = vcmp.eq.s32.totalorder %v1852, 0
        %v1855 = vxor.u32 %v1849, 2147483648
        %v1856 = vsel %vm1854, %v1848, %v1855
        %vm1857 = vcmp.eq.s32.totalorder %v1852, 2
        %v1858 = vxor.u32 %v1848, 2147483648
        %v1859 = vsel %vm1857, %v1858, %v1849
        %v1860 = vsel %vm1853, %v1856, %v1859
        %v1861 = vsel %vm1850, nan, %v1860
        %v1862 = vand.u32 2147483647, %v404
        %vm1863 = vcmp.le.f32.partialorder %v1862, 0.7853982
        %vm1864 = vcmp.lt.s32.totalorder %v404, 0
        %v1865 = vand.u32 %v404, 2139095040
        %v1866 = vshrl.u32 %v1865, 23
        %v1867 = vsub.s32 %v1866, 127
        %v1868 = vand.u32 2147483647, %v404
        %v1869 = vand.u32 %v1868, 8388607
        %v1870 = vor.u32 %v1869, 8388608
        %v1871 = vsub.s32 0, %v1870
        %v1872 = vadd.s32 %v1867, 1
        %vm1873 = vcmp.gt.s32.totalorder %v1872, 0
        %v1874 = vsel %vm1873, %v1872, 0
        %v1875 = vshrl.u32 %v1874, 5
        %v1876 = vand.u32 %v1874, 31
        %v1877 = vsub.s32 32, %v1876
        %v1878 = vshrl.u32 683565275, %v1877
        %v1879 = vshll.u32 683565275, %v1876
        %v1880 = vshrl.u32 2475754826, %v1877
        %v1881 = vor.u32 %v1879, %v1880
        %v1882 = vshll.u32 2475754826, %v1876
        %v1883 = vshrl.u32 2131351028, %v1877
        %v1884 = vor.u32 %v1882, %v1883
        %v1885 = vshll.u32 2131351028, %v1876
        %v1886 = vshrl.u32 2102212464, %v1877
        %v1887 = vor.u32 %v1885, %v1886
        %v1888 = vshll.u32 2102212464, %v1876
        %v1889 = vshrl.u32 920167782, %v1877
        %v1890 = vor.u32 %v1888, %v1889
        %v1891 = vshll.u32 920167782, %v1876
        %v1892 = vshrl.u32 1326507024, %v1877
        %v1893 = vor.u32 %v1891, %v1892
        %vm1894 = vcmp.lt.s32.totalorder %v1875, 1
        %vm1895 = vcmp.lt.s32.totalorder %v1875, 2
        %vm1896 = vcmp.lt.s32.totalorder %v1875, 3
        %vm1897 = vcmp.lt.s32.totalorder %v1875, 4
        %v1898 = vsel %vm1894, %v1878, %v1881
        %v1899 = vsel %vm1897, %v1887, 2102212464
        %v1900 = vsel %vm1896, %v1884, %v1899
        %v1901 = vsel %vm1895, %v1898, %v1900
        %v1902 = vsel %vm1894, %v1881, %v1884
        %v1903 = vsel %vm1897, %v1890, 920167782
        %v1904 = vsel %vm1896, %v1887, %v1903
        %v1905 = vsel %vm1895, %v1902, %v1904
        %v1906 = vsel %vm1894, %v1884, %v1887
        %v1907 = vsel %vm1897, %v1893, 1326507024
        %v1908 = vsel %vm1896, %v1890, %v1907
        %v1909 = vsel %vm1895, %v1906, %v1908
        %v1910 = vshll.u32 %v1870, 8
        %v1911 = vmul.u32.u64.compose %v1910, %v1909
        %v1912 = vextract.low.u32 %v1911
        %v1913 = vextract.high.u32 %v1911
        %v1914 = vmul.u32.u64.compose %v1910, %v1905
        %v1915 = vextract.low.u32 %v1914
        %v1916 = vextract.high.u32 %v1914
        %v1917 = vmul.u32 %v1910, %v1901
        %v1918 = vadd.s32 %v1913, %v1915
        %vm1919 = vc.u32 %v1913, %v1915
        %v1920 = vadd.s32 %v1916, 1
        %v1921 = vsel %vm1919, %v1920, %v1916
        %v1922 = vadd.s32 %v1917, %v1921
        %v1923 = vadd.s32 %v1922, 536870912
        %v1924 = vshrl.u32 %v1923, 30
        %v1925 = vshll.u32 %v1924, 30
        %v1926 = vsub.s32 %v1922, %v1925
        %vm1927 = vcmp.lt.s32.totalorder %v1926, 0
        %v1928 = vsub.s32 0, %v1926
        %v1929 = vsel %vm1927, %v1928, %v1926
        %v1930 = vclz %v1929
        %v1931 = vsub.s32 %v1930, 2
        %vm1932 = vcmp.gt.s32.totalorder 0, %v1931
        %v1933 = vsel %vm1932, 0, %v1931
        %v1934 = vsub.s32 32, %v1933
        %v1935 = vshll.u32 %v1926, %v1933
        %v1936 = vshrl.u32 %v1918, %v1934
        %v1937 = vor.u32 %v1935, %v1936
        %v1938 = vsub.s32 4294967266, %v1933
        %v1939 = vadd.s32 %v1938, 127
        %v1940 = vshll.u32 %v1939, 23
        %v1941 = vor.u32 4788187, %v1940
        %v1942 = vand.u32 2147483647, %v1941
        %v1944 = vcvt.s32.f32 %v1937
        %v1945 = vmul.f32 %v1944, %v1942
        %v1946 = vxor.u32 %v1945, 2147483648
        %v1947 = vsel %vm1864, %v1946, %v1945
        %v1948 = vsub.s32 4, %v1924
        %v1949 = vsel %vm1864, %v1948, %v1924
        %v1950 = vsel %vm1863, %v404, %v1947
        %v1951 = vsel %vm1863, 0, %v1949
        %v1952 = vcosq.f32.pop %v1950
        %v1953 = vsinq.f32.pop %v1950
        %vm1954 = vweird.f32 %v404
        %v1955 = vadd.s32 %v1951, 3
        %v1956 = vand.u32 %v1955, 3
        %vm1957 = vcmp.lt.s32.totalorder %v1956, 2
        %vm1958 = vcmp.eq.s32.totalorder %v1956, 0
        %v1959 = vxor.u32 %v1953, 2147483648
        %v1960 = vsel %vm1958, %v1952, %v1959
        %vm1961 = vcmp.eq.s32.totalorder %v1956, 2
        %v1962 = vxor.u32 %v1952, 2147483648
        %v1963 = vsel %vm1961, %v1962, %v1953
        %v1964 = vsel %vm1957, %v1960, %v1963
        %v1965 = vsel %vm1954, nan, %v1964
        %v1966 = vand.u32 2147483647, %v405
        %vm1967 = vcmp.le.f32.partialorder %v1966, 0.7853982
        %vm1968 = vcmp.lt.s32.totalorder %v405, 0
        %v1969 = vand.u32 %v405, 2139095040
        %v1970 = vshrl.u32 %v1969, 23
        %v1971 = vsub.s32 %v1970, 127
        %v1972 = vand.u32 2147483647, %v405
        %v1973 = vand.u32 %v1972, 8388607
        %v1974 = vor.u32 %v1973, 8388608
        %v1975 = vsub.s32 0, %v1974
        %v1976 = vadd.s32 %v1971, 1
        %vm1977 = vcmp.gt.s32.totalorder %v1976, 0
        %v1978 = vsel %vm1977, %v1976, 0
        %v1979 = vshrl.u32 %v1978, 5
        %v1980 = vand.u32 %v1978, 31
        %v1981 = vsub.s32 32, %v1980
        %v1982 = vshrl.u32 683565275, %v1981
        %v1983 = vshll.u32 683565275, %v1980
        %v1984 = vshrl.u32 2475754826, %v1981
        %v1985 = vor.u32 %v1983, %v1984
        %v1986 = vshll.u32 2475754826, %v1980
        %v1987 = vshrl.u32 2131351028, %v1981
        %v1988 = vor.u32 %v1986, %v1987
        %v1989 = vshll.u32 2131351028, %v1980
        %v1990 = vshrl.u32 2102212464, %v1981
        %v1991 = vor.u32 %v1989, %v1990
        %v1992 = vshll.u32 2102212464, %v1980
        %v1993 = vshrl.u32 920167782, %v1981
        %v1994 = vor.u32 %v1992, %v1993
        %v1995 = vshll.u32 920167782, %v1980
        %v1996 = vshrl.u32 1326507024, %v1981
        %v1997 = vor.u32 %v1995, %v1996
        %vm1998 = vcmp.lt.s32.totalorder %v1979, 1
        %vm1999 = vcmp.lt.s32.totalorder %v1979, 2
        %vm2000 = vcmp.lt.s32.totalorder %v1979, 3
        %vm2001 = vcmp.lt.s32.totalorder %v1979, 4
        %v2002 = vsel %vm1998, %v1982, %v1985
        %v2003 = vsel %vm2001, %v1991, 2102212464
        %v2004 = vsel %vm2000, %v1988, %v2003
        %v2005 = vsel %vm1999, %v2002, %v2004
        %v2006 = vsel %vm1998, %v1985, %v1988
        %v2007 = vsel %vm2001, %v1994, 920167782
        %v2008 = vsel %vm2000, %v1991, %v2007
        %v2009 = vsel %vm1999, %v2006, %v2008
        %v2010 = vsel %vm1998, %v1988, %v1991
        %v2011 = vsel %vm2001, %v1997, 1326507024
        %v2012 = vsel %vm2000, %v1994, %v2011
        %v2013 = vsel %vm1999, %v2010, %v2012
        %v2014 = vshll.u32 %v1974, 8
        %v2015 = vmul.u32.u64.compose %v2014, %v2013
        %v2016 = vextract.low.u32 %v2015
        %v2017 = vextract.high.u32 %v2015
        %v2018 = vmul.u32.u64.compose %v2014, %v2009
        %v2019 = vextract.low.u32 %v2018
        %v2020 = vextract.high.u32 %v2018
        %v2021 = vmul.u32 %v2014, %v2005
        %v2022 = vadd.s32 %v2017, %v2019
        %vm2023 = vc.u32 %v2017, %v2019
        %v2024 = vadd.s32 %v2020, 1
        %v2025 = vsel %vm2023, %v2024, %v2020
        %v2026 = vadd.s32 %v2021, %v2025
        %v2027 = vadd.s32 %v2026, 536870912
        %v2028 = vshrl.u32 %v2027, 30
        %v2029 = vshll.u32 %v2028, 30
        %v2030 = vsub.s32 %v2026, %v2029
        %vm2031 = vcmp.lt.s32.totalorder %v2030, 0
        %v2032 = vsub.s32 0, %v2030
        %v2033 = vsel %vm2031, %v2032, %v2030
        %v2034 = vclz %v2033
        %v2035 = vsub.s32 %v2034, 2
        %vm2036 = vcmp.gt.s32.totalorder 0, %v2035
        %v2037 = vsel %vm2036, 0, %v2035
        %v2038 = vsub.s32 32, %v2037
        %v2039 = vshll.u32 %v2030, %v2037
        %v2040 = vshrl.u32 %v2022, %v2038
        %v2041 = vor.u32 %v2039, %v2040
        %v2042 = vsub.s32 4294967266, %v2037
        %v2043 = vadd.s32 %v2042, 127
        %v2044 = vshll.u32 %v2043, 23
        %v2045 = vor.u32 4788187, %v2044
        %v2046 = vand.u32 2147483647, %v2045
        %v2048 = vcvt.s32.f32 %v2041
        %v2049 = vmul.f32 %v2048, %v2046
        %v2050 = vxor.u32 %v2049, 2147483648
        %v2051 = vsel %vm1968, %v2050, %v2049
        %v2052 = vsub.s32 4, %v2028
        %v2053 = vsel %vm1968, %v2052, %v2028
        %v2054 = vsel %vm1967, %v405, %v2051
        %v2055 = vsel %vm1967, 0, %v2053
        %v2056 = vcosq.f32.pop %v2054
        %v2057 = vsinq.f32.pop %v2054
        %vm2058 = vweird.f32 %v405
        %v2059 = vadd.s32 %v2055, 3
        %v2060 = vand.u32 %v2059, 3
        %vm2061 = vcmp.lt.s32.totalorder %v2060, 2
        %vm2062 = vcmp.eq.s32.totalorder %v2060, 0
        %v2063 = vxor.u32 %v2057, 2147483648
        %v2064 = vsel %vm2062, %v2056, %v2063
        %vm2065 = vcmp.eq.s32.totalorder %v2060, 2
        %v2066 = vxor.u32 %v2056, 2147483648
        %v2067 = vsel %vm2065, %v2066, %v2057
        %v2068 = vsel %vm2061, %v2064, %v2067
        %v2069 = vsel %vm2058, nan, %v2068
        %2070 = vst [vmem:[%s203] sm:$0xff] %v509
        %2071 = vst [vmem:[%s203 + $0x8] sm:$0xff] %v613
        %2072 = vst [vmem:[%s203 + $0x10] sm:$0xff] %v717
        %2073 = vst [vmem:[%s203 + $0x18] sm:$0xff] %v821
        %2074 = vst [vmem:[%s203 + $0x20] sm:$0xff] %v925
        %2075 = vst [vmem:[%s203 + $0x28] sm:$0xff] %v1029
        %2076 = vst [vmem:[%s203 + $0x30] sm:$0xff] %v1133
        %2077 = vst [vmem:[%s203 + $0x38] sm:$0xff] %v1237
        %2078 = vst [vmem:[%s203 + $0x40] sm:$0xff] %v1341
        %2079 = vst [vmem:[%s203 + $0x48] sm:$0xff] %v1445
        %2080 = vst [vmem:[%s203 + $0x50] sm:$0xff] %v1549
        %2081 = vst [vmem:[%s203 + $0x58] sm:$0xff] %v1653
        %2082 = vst [vmem:[%s203 + $0x60] sm:$0xff] %v1757
        %2083 = vst [vmem:[%s203 + $0x68] sm:$0xff] %v1861
        %2084 = vst [vmem:[%s203 + $0x70] sm:$0xff] %v1965
        %2085 = vst [vmem:[%s203 + $0x78] sm:$0xff] %v2069
        %s2086 = sand.u32 %s97, 1
        %s2087 = scalar_lea.sflag [#allocation4], %s2086
        %s2088 = sand.u32 %s97, 1
        %s2089 = smul.addr %s2088, 128
        %s2090 = scalar_lea.vmem [#allocation7], %s2089
        // Predicated region
        $region41: #{tpu_custom_call.1} parent=31 // pred_check
          %p2091 = pneg %p107
        $region42: #{tpu_custom_call.1} parent=31 // pred_check_branch
          %2093 = sbr.rel (%p2091) target = $region44
        $region43: #{tpu_custom_call.1} parent=31 // pred_region
          %s2094 = smul.u32 16, %s21
          %s2096 = ssub.s32 2048, 2048
          %2097 = vsyncadd %s2087, %s2096
          %s2098 = smul.addr %s2094, 128
          %s2099 = scalar_lea.hbm %s3, %s2098
          %s2100 = sshll.u32 %s2090, 4
          %s2101 = int_to_ptr.vmem [resolvable:$true] %s2100
          %2106 = dma.vmem_to_hbm [thread:$0]  %s2101, 2048, %s2099, %s2087, 128, 128, 8
        $region44: #{tpu_custom_call.1} parent=31 // pred_fallthru
          _
      $region32: #{tpu_custom_call.1} parent=5 // pred_fallthru
        _
      %p2107 = scmp.le.s32.totalorder 2, %s16
      // Predicated region
      $region45: #{tpu_custom_call.1} parent=5 // pred_check
        %p2108 = pneg %p2107
      $region46: #{tpu_custom_call.1} parent=5 // pred_check_branch
        %2110 = sbr.rel (%p2108) target = $region48
      $region47: #{tpu_custom_call.1} parent=5 // pred_region
        %s2111 = ssub.s32 %s16, 2
        // Predicated region
        $region49: #{tpu_custom_call.1} parent=47 // pred_check
          %p2112 = pneg %p113
        $region50: #{tpu_custom_call.1} parent=47 // pred_check_branch
          %2114 = sbr.rel (%p2112) target = $region52
        $region51: #{tpu_custom_call.1} parent=47 // pred_region
          %s2115 = sand.u32 %s98, 1
          %s2116 = scalar_lea.sflag [#allocation4], %s2115
          %s2117 = sand.u32 %s98, 1
          %s2118 = smul.addr %s2117, 128
          %s2119 = scalar_lea.vmem [#allocation7], %s2118
          %2120 = dma.done %s2116, 2048
        $region52: #{tpu_custom_call.1} parent=47 // pred_fallthru
          _
      $region48: #{tpu_custom_call.1} parent=5 // pred_fallthru
        _
    $region6: #{tpu_custom_call.1} parent=1 // loop_footer
      %s20 = sadd.s32 1, %s16
    $region7: #{tpu_custom_call.1} parent=1 // loop_footer_branch
      %15 = sbr.rel target = $region3
    $region8: #{tpu_custom_call.1} parent=1 // loop_exit
      _
    %2121 = vsyncpa [#allocation3], 1
    %s2122 = scalar_lea.sflag [#allocation3], 1
    %2123 = vsyncpa %s2122, 1
    %2124 = vsyncpa [#allocation6], 1
    %2125 = vsyncpa [#allocation4], 1
    %s2126 = scalar_lea.sflag [#allocation4], 1
    %2127 = vsyncpa %s2126, 1

</llo_original>
